<compile_context>
chip_gen: v7x
topology: tpu7x:2x2x1
jax: 0.10.0
libtpu: 0.0.40
codegen_flags: <defaults>
</compile_context>

<pallas_src>
import numpy as np
import jax
import jax.numpy as jnp
from jax import lax
from jax.experimental import pallas as pl
from jax.experimental.pallas import tpu as pltpu

SAMPLE_RATE = 16000
FRAME_LEN   = int(0.025 * SAMPLE_RATE)        # 400 samples (frame_length=25ms)
FRAME_SHIFT = int(0.010 * SAMPLE_RATE)        # 160 samples (frame_shift=10ms)
N_FFT       = 512
N_BINS      = N_FFT // 2 + 1                  # 257 (bins >= 250 have zero mel weight)
PAD_BINS    = 256                             # kept FFT bins, lane aligned (2x128)
NUM_MEL     = 80                              # num_mel_bins
FEAT_PAD    = 128                             # [energy | 80 mel | zeros] -> 128 lanes
PREEMPH     = 0.97
LOW_FREQ    = 40.0
HIGH_FREQ   = SAMPLE_RATE / 2.0 - 200.0       # high_freq=-200 -> nyquist - 200 = 7800 Hz
EMB_DIM     = 32                              # small synthetic embedding dim
EPS_LOG     = 1.1920929e-07                   # kaldi float epsilon (log floor)
LOG_EPS     = float(np.log(EPS_LOG))          # log of the floor (exact value of a zero row)
COS_EPS     = 1e-8                            # F.cosine_similarity default eps
MAX_TILE_F  = 2048                            # frame-tile size (VMEM ~<25 MiB at bf16)


# ----------------------------------------------------------------------------
# Constant tables (built once, in numpy, f64 -> cast at the call site)
# ----------------------------------------------------------------------------
def _folded_dft_table():
    """(FRAME_LEN, 2*PAD_BINS): DC-offset removal + preemphasis + povey window +
    truncated DFT (real|imag) folded into one matmul constant.  Columns 0..255
    are cos of bins 0..255, columns 256..511 are sin."""
    n = np.arange(FRAME_LEN, dtype=np.float64)
    window = (0.5 - 0.5 * np.cos(2.0 * np.pi * n / (FRAME_LEN - 1))) ** 0.85   # povey
    # preemphasis acting on the lane (sample) axis of a row-vector frame:
    #   out[0] = (1-c) x[0];  out[j] = x[j] - c x[j-1]
    A = np.eye(FRAME_LEN)
    A[0, 0] = 1.0 - PREEMPH
    j = np.arange(1, FRAME_LEN)
    A[j - 1, j] = -PREEMPH
    PW = A * window[None, :]                          # A @ diag(window)
    k = np.arange(FRAME_LEN, dtype=np.float64)[:, None]
    b = np.arange(PAD_BINS, dtype=np.float64)[None, :]
    ang = 2.0 * np.pi * k * b / N_FFT                 # zero-pad to 512 == truncated DFT rows
    tbl = np.concatenate([PW @ np.cos(ang), PW @ np.sin(ang)], axis=1)   # (400, 512)
    # fold remove_dc_offset:  x @ (I - 11^T/400) @ tbl  ==  x @ (tbl - colmean(tbl))
    tbl = tbl - tbl.mean(axis=0, keepdims=True)
    return tbl.astype(np.float32)


def _mel_table():
    """(PAD_BINS, FEAT_PAD): kaldi triangular mel filters in columns 1..80
    (column 0 reserved for log-energy), zero elsewhere."""
    def mel(f):
        return 1127.0 * np.log(1.0 + f / 700.0)
    fft_freqs = np.arange(PAD_BINS, dtype=np.float64) * (SAMPLE_RATE / N_FFT)
    mel_low, mel_high = mel(LOW_FREQ), mel(HIGH_FREQ)
    mel_delta = (mel_high - mel_low) / (NUM_MEL + 1)
    mel_pts = mel_low + np.arange(NUM_MEL + 2, dtype=np.float64) * mel_delta
    m = mel(fft_freqs)[None, :]                                  # (1, PAD_BINS)
    left, center, right = mel_pts[:-2, None], mel_pts[1:-1, None], mel_pts[2:, None]
    up = (m - left) / (center - left)
    down = (right - m) / (right - center)
    fb = np.maximum(0.0, np.minimum(up, down))                   # (NUM_MEL, PAD_BINS)
    out = np.zeros((PAD_BINS, FEAT_PAD), dtype=np.float64)
    out[:, 1:1 + NUM_MEL] = fb.T
    return out.astype(np.float32)


_DFT_TABLE = _folded_dft_table()
_MEL_TABLE = _mel_table()


# ----------------------------------------------------------------------------
# Prologue: framing without gather (kaldi snip_edges=True), in bf16
# ----------------------------------------------------------------------------
def _frames_no_gather(waveform):
    """Framing via reshape + 3 static slices. DC removal is folded into the DFT
    table and log-energy is computed in-kernel, so frames are the raw samples.
    Returns ((num_frames, FRAME_LEN) bf16, num_frames)."""
    w = waveform.astype(jnp.bfloat16)                 # halve the framing HBM stream
    T = w.shape[0]
    num_frames = 1 + (T - FRAME_LEN) // FRAME_SHIFT
    need = (num_frames + 2) * FRAME_SHIFT             # covers every sample any frame touches
    if need > T:
        w = jnp.pad(w, (0, need - T))
    else:
        w = w[:need]
    blocks = w.reshape(num_frames + 2, FRAME_SHIFT)   # (F+2, 160)
    tail = FRAME_LEN - 2 * FRAME_SHIFT                # 80
    frames = jnp.concatenate(
        [blocks[:num_frames],
         blocks[1:num_frames + 1],
         blocks[2:num_frames + 2, :tail]], axis=1)    # frame i = wav[i*160 : i*160+400]
    return frames, num_frames


# ----------------------------------------------------------------------------
# Fused kernel: fbank + InputSequenceNormalization stats + embedding + cosine
# ----------------------------------------------------------------------------
def xvector_loss(waveform, xv_target, w_emb, get_cosine_similarity=False):
    frames, num_frames = _frames_no_gather(waveform)

    tile_f = min(MAX_TILE_F, ((num_frames + 7) // 8) * 8)
    f_pad = ((num_frames + tile_f - 1) // tile_f) * tile_f
    if f_pad > num_frames:
        frames = jnp.pad(frames, ((0, f_pad - num_frames), (0, 0)))
    num_tiles = f_pad // tile_f

    xvt = xv_target.reshape(1, EMB_DIM).astype(jnp.float32)
    inv_flen = 1.0 / FRAME_LEN

    def kernel(frames_ref, dft_ref, mel_ref, w_ref, xvt_ref, cos_ref,
               mean_acc, m2_acc):
        i = pl.program_id(0)
        is_last = i == pl.num_programs(0) - 1

        @pl.when(i == 0)
        def _init():
            mean_acc[...] = jnp.zeros_like(mean_acc)
            m2_acc[...] = jnp.zeros_like(m2_acc)

        fr = frames_ref[...]                                      # (tile_f, 400) bf16, raw
        frf = fr.astype(jnp.float32)
        # raw log-energy (kaldi raw_energy=True, on the DC-removed frame):
        #   sum((x-mean)^2) = Sx2 - Sx^2/400
        sx = jnp.sum(frf, axis=1, keepdims=True)                  # (tile_f, 1)
        sx2 = jnp.sum(frf * frf, axis=1, keepdims=True)
        loge = jnp.log(jnp.maximum(sx2 - sx * sx * inv_flen, EPS_LOG))

        # DC removal + preemph + povey window + real/imag DFT: one bf16 MXU matmul
        spec = jnp.dot(fr, dft_ref[...], preferred_element_type=jnp.float32)  # (tile_f, 512)
        re = spec[:, :PAD_BINS]
        im = spec[:, PAD_BINS:]
        power = re * re + im * im                                 # (tile_f, 256) f32
        mel_e = jnp.dot(power.astype(jnp.bfloat16), mel_ref[...],
                        preferred_element_type=jnp.float32)       # (tile_f, 128)
        logmel = jnp.log(jnp.maximum(mel_e, EPS_LOG))
        # energy into column 0: mel column 0 is all-zero -> logmel[:,0] == log(EPS_LOG)
        onehot0 = (lax.broadcasted_iota(jnp.int32, (1, FEAT_PAD), 1) == 0
                   ).astype(jnp.float32)
        feat = logmel + onehot0 * (loge - LOG_EPS)                # (tile_f, 128)

        def merge(tmean, tm2, tcount):
            # Chan/Welford merge of (tile mean, tile centered-M2, tile count)
            # into the running stats; previous tiles are always full.
            run_n = (i * tile_f).astype(jnp.float32)
            tot = run_n + tcount
            old_mean = mean_acc[...]
            delta = tmean - old_mean
            mean_acc[...] = old_mean + delta * (tcount / tot)
            m2_acc[...] = m2_acc[...] + tm2 + (delta * delta) * (run_n * tcount / tot)

        @pl.when(jnp.logical_not(is_last))
        def _acc_full():                                          # full tiles: no masking
            tmean = jnp.sum(feat, axis=0, keepdims=True) * (1.0 / tile_f)
            d = feat - tmean
            merge(tmean, jnp.sum(d * d, axis=0, keepdims=True), jnp.float32(tile_f))

        @pl.when(is_last)
        def _acc_last():                                          # mask padded frame rows
            rem = jnp.int32(num_frames) - i * tile_f              # valid rows, 1..tile_f
            remf = rem.astype(jnp.float32)
            row = lax.broadcasted_iota(jnp.int32, (tile_f, FEAT_PAD), 0)
            valid = row < rem
            tmean = jnp.sum(jnp.where(valid, feat, 0.0), axis=0, keepdims=True) / remf
            d = jnp.where(valid, feat - tmean, 0.0)
            merge(tmean, jnp.sum(d * d, axis=0, keepdims=True), remf)

        @pl.when(is_last)
        def _finalize():
            # InputSequenceNormalization subtracts the time mean (std_norm=False).
            # Stand-in embedding = temporal std pooling of the normalized feats
            # (== std of the raw feats; the mean never needs materializing)
            # followed by a linear projection.  Population variance.
            var = jnp.maximum(m2_acc[...] * (1.0 / num_frames), 0.0)      # (1, 128)
            std_pool = jnp.sqrt(var)
            lane = lax.broadcasted_iota(jnp.int32, (1, FEAT_PAD), 1)
            std_pool = jnp.where(lane < 1 + NUM_MEL, std_pool, 0.0)       # kill padded lanes
            xv = jnp.dot(std_pool, w_ref[...], preferred_element_type=jnp.float32)  # (1, E)
            xvt_v = xvt_ref[...]                                          # (1, E)
            # F.cosine_similarity(xv, xv_target, dim=0), eps=1e-8 (rsqrt on EUP)
            dotp = jnp.sum(xv * xvt_v)
            n1 = jnp.sum(xv * xv)
            n2 = jnp.sum(xvt_v * xvt_v)
            eps2 = jnp.float32(COS_EPS * COS_EPS)
            cos = dotp * lax.rsqrt(jnp.maximum(n1, eps2)) * lax.rsqrt(jnp.maximum(n2, eps2))
            cos_ref[...] = jnp.broadcast_to(cos, (1, 1))

    cos = pl.pallas_call(
        kernel,
        out_shape=jax.ShapeDtypeStruct((1, 1), jnp.float32),
        grid_spec=pltpu.PrefetchScalarGridSpec(
            num_scalar_prefetch=0,
            grid=(num_tiles,),
            in_specs=[
                pl.BlockSpec((tile_f, FRAME_LEN), lambda i: (i, 0)),        # frames (pipelined)
                pl.BlockSpec((FRAME_LEN, 2 * PAD_BINS), lambda i: (0, 0)),  # folded DFT (resident)
                pl.BlockSpec((PAD_BINS, FEAT_PAD), lambda i: (0, 0)),       # mel FB (resident)
                pl.BlockSpec((FEAT_PAD, EMB_DIM), lambda i: (0, 0)),        # stand-in projection
                pl.BlockSpec((1, EMB_DIM), lambda i: (0, 0)),               # target embedding
            ],
            out_specs=pl.BlockSpec((1, 1), lambda i: (0, 0)),
            scratch_shapes=[pltpu.VMEM((1, FEAT_PAD), jnp.float32),         # running mean
                            pltpu.VMEM((1, FEAT_PAD), jnp.float32)],        # running centered M2
        ),
        compiler_params=pltpu.CompilerParams(
            # Cross-tile Welford accumulation in scratch -> reduction axis is "arbitrary".
            dimension_semantics=("arbitrary",),
            vmem_limit_bytes=48 * 1024 * 1024),
    )(frames,
      jnp.asarray(_DFT_TABLE, dtype=jnp.bfloat16),
      jnp.asarray(_MEL_TABLE, dtype=jnp.bfloat16),
      w_emb.astype(jnp.float32), xvt)[0, 0]

    if get_cosine_similarity:
        return cos
    return 1.0 - cos


if __name__ == "__main__":
    key = jax.random.PRNGKey(0)
    k1, k2, k3 = jax.random.split(key, 3)

    T = 3200                                   # 0.2 s of 16 kHz audio -> 18 frames
    waveform = jax.random.normal(k1, (T,), dtype=jnp.float32)
    xv_target = jax.random.normal(k2, (EMB_DIM,), dtype=jnp.float32)
    # deterministic stand-in weights for the (untranslatable) jit x-vector model
    w_emb = 0.05 * jax.random.normal(k3, (FEAT_PAD, EMB_DIM), dtype=jnp.float32)

    loss = xvector_loss(waveform, xv_target, w_emb)
    loss = jax.block_until_ready(loss)
    assert loss.shape == () and jnp.isfinite(loss)
    print("KERNEL_OK")
</pallas_src>

<mosaic_0001>
module attributes {stable_mosaic.version = 11 : i64} {
  func.func @kernel(%arg0: i32, %arg1: memref<24x400xbf16, #tpu.memory_space<vmem>>, %arg2: memref<400x512xbf16, #tpu.memory_space<vmem>>, %arg3: memref<256x128xbf16, #tpu.memory_space<vmem>>, %arg4: memref<128x32xf32, #tpu.memory_space<vmem>>, %arg5: memref<1x32xf32, #tpu.memory_space<vmem>>, %arg6: memref<1x1xf32, #tpu.memory_space<vmem>>, %arg7: memref<1x128xf32, #tpu.memory_space<vmem>>, %arg8: memref<1x128xf32, #tpu.memory_space<vmem>>) attributes {dimension_semantics = [#tpu.dimension_semantics<arbitrary>], iteration_bounds = array<i64: 1>, scalar_prefetch = 0 : i64, scratch_operands = 2 : i64, tpu.core_type = #tpu.core_type<tc>, window_params = [{transform_indices = @transform_0, window_bounds = array<i64: 24, 400>}, {pipeline_mode = #tpu.pipeline_mode<synchronous>, transform_indices = @transform_1, window_bounds = array<i64: 400, 512>}, {pipeline_mode = #tpu.pipeline_mode<synchronous>, transform_indices = @transform_2, window_bounds = array<i64: 256, 128>}, {pipeline_mode = #tpu.pipeline_mode<synchronous>, transform_indices = @transform_3, window_bounds = array<i64: 128, 32>}, {pipeline_mode = #tpu.pipeline_mode<synchronous>, transform_indices = @transform_4, window_bounds = array<i64: 1, 32>}, {pipeline_mode = #tpu.pipeline_mode<synchronous>, transform_indices = @transform_5, window_bounds = array<i64: 1, 1>}]} {
    %c0_i32 = arith.constant 0 : i32
    %0 = arith.cmpi eq, %arg0, %c0_i32 : i32
    %c0_i32_0 = arith.constant 0 : i32
    %1 = arith.cmpi eq, %arg0, %c0_i32_0 : i32
    %2 = arith.extui %1 : i1 to i32
    %c0_i32_1 = arith.constant 0 : i32
    %3 = arith.cmpi ne, %2, %c0_i32_1 : i32
    scf.if %3 {
      %cst_18 = arith.constant 0.000000e+00 : f32
      %49 = vector.broadcast %cst_18 : f32 to vector<1x128xf32>
      %c0_19 = arith.constant 0 : index
      %c0_20 = arith.constant 0 : index
      %50 = vector.load %arg7[%c0_19, %c0_20] : memref<1x128xf32, #tpu.memory_space<vmem>>, vector<1x128xf32>
      tpu.vector_store %arg7[%c0_19, %c0_20], %49 {strides = array<i32>} : memref<1x128xf32, #tpu.memory_space<vmem>>, vector<1x128xf32>,
      %cst_21 = arith.constant 0.000000e+00 : f32
      %51 = vector.broadcast %cst_21 : f32 to vector<1x128xf32>
      %c0_22 = arith.constant 0 : index
      %c0_23 = arith.constant 0 : index
      %52 = vector.load %arg8[%c0_22, %c0_23] : memref<1x128xf32, #tpu.memory_space<vmem>>, vector<1x128xf32>
      tpu.vector_store %arg8[%c0_22, %c0_23], %51 {strides = array<i32>} : memref<1x128xf32, #tpu.memory_space<vmem>>, vector<1x128xf32>,
    } else {
    }
    %c0 = arith.constant 0 : index
    %c0_2 = arith.constant 0 : index
    %4 = vector.load %arg1[%c0, %c0_2] : memref<24x400xbf16, #tpu.memory_space<vmem>>, vector<24x400xbf16>
    %5 = arith.extf %4 : vector<24x400xbf16> to vector<24x400xf32>
    %cst = arith.constant dense<0.000000e+00> : vector<24xf32>
    %6 = vector.multi_reduction <add>, %5, %cst [1] : vector<24x400xf32> to vector<24xf32>
    %7 = vector.shape_cast %6 : vector<24xf32> to vector<24x1xf32>
    %8 = arith.mulf %5, %5 : vector<24x400xf32>
    %cst_3 = arith.constant dense<0.000000e+00> : vector<24xf32>
    %9 = vector.multi_reduction <add>, %8, %cst_3 [1] : vector<24x400xf32> to vector<24xf32>
    %10 = vector.shape_cast %9 : vector<24xf32> to vector<24x1xf32>
    %11 = arith.mulf %7, %7 : vector<24x1xf32>
    %cst_4 = arith.constant 2.500000e-03 : f32
    %12 = vector.broadcast %cst_4 : f32 to vector<24x1xf32>
    %13 = arith.mulf %11, %12 : vector<24x1xf32>
    %14 = arith.subf %10, %13 : vector<24x1xf32>
    %cst_5 = arith.constant 1.1920929E-7 : f32
    %15 = vector.broadcast %cst_5 : f32 to vector<24x1xf32>
    %16 = arith.maximumf %14, %15 : vector<24x1xf32>
    %17 = math.log %16 : vector<24x1xf32>
    %c0_6 = arith.constant 0 : index
    %c0_7 = arith.constant 0 : index
    %18 = vector.load %arg2[%c0_6, %c0_7] : memref<400x512xbf16, #tpu.memory_space<vmem>>, vector<400x512xbf16>
    %cst_8 = arith.constant dense<0.000000e+00> : vector<24x512xf32>
    %19 = tpu.matmul %4, %18, %cst_8 {dimension_numbers = #tpu.dot_dimension_numbers<[1], [0], [0], [1], [0, 0, 1, 1], [], []>} : vector<24x400xbf16>, vector<400x512xbf16>, vector<24x512xf32> -> vector<24x512xf32>
    %20 = vector.extract_strided_slice %19 {offsets = [0, 0], sizes = [24, 256], strides = [1, 1]} : vector<24x512xf32> to vector<24x256xf32>
    %21 = vector.extract_strided_slice %19 {offsets = [0, 256], sizes = [24, 256], strides = [1, 1]} : vector<24x512xf32> to vector<24x256xf32>
    %22 = arith.mulf %20, %20 : vector<24x256xf32>
    %23 = arith.mulf %21, %21 : vector<24x256xf32>
    %24 = arith.addf %22, %23 : vector<24x256xf32>
    %25 = arith.truncf %24 : vector<24x256xf32> to vector<24x256xbf16>
    %c0_9 = arith.constant 0 : index
    %c0_10 = arith.constant 0 : index
    %26 = vector.load %arg3[%c0_9, %c0_10] : memref<256x128xbf16, #tpu.memory_space<vmem>>, vector<256x128xbf16>
    %cst_11 = arith.constant dense<0.000000e+00> : vector<24x128xf32>
    %27 = tpu.matmul %25, %26, %cst_11 {dimension_numbers = #tpu.dot_dimension_numbers<[1], [0], [0], [1], [0, 0, 1, 1], [], []>} : vector<24x256xbf16>, vector<256x128xbf16>, vector<24x128xf32> -> vector<24x128xf32>
    %cst_12 = arith.constant 1.1920929E-7 : f32
    %28 = vector.broadcast %cst_12 : f32 to vector<24x128xf32>
    %29 = arith.maximumf %27, %28 : vector<24x128xf32>
    %30 = math.log %29 : vector<24x128xf32>
    %31 = tpu.iota {dimensions = array<i32: 1>} : vector<1x128xi32>
    %c0_i32_13 = arith.constant 0 : i32
    %32 = vector.broadcast %c0_i32_13 : i32 to vector<1x128xi32>
    %33 = arith.cmpi eq, %31, %32 : vector<1x128xi32>
    %34 = arith.extui %33 : vector<1x128xi1> to vector<1x128xi32>
    %35 = arith.sitofp %34 : vector<1x128xi32> to vector<1x128xf32>
    %cst_14 = arith.constant -15.9423847 : f32
    %36 = vector.broadcast %cst_14 : f32 to vector<24x1xf32>
    %37 = arith.subf %17, %36 : vector<24x1xf32>
    %38 = vector.broadcast %35 : vector<1x128xf32> to vector<24x128xf32>
    %39 = vector.broadcast %37 : vector<24x1xf32> to vector<24x128xf32>
    %40 = arith.mulf %38, %39 : vector<24x128xf32>
    %41 = arith.addf %30, %40 : vector<24x128xf32>
    %true = arith.constant true
    %42 = arith.xori %0, %true : i1
    %43 = arith.extui %42 : i1 to i32
    %c0_i32_15 = arith.constant 0 : i32
    %44 = arith.cmpi ne, %43, %c0_i32_15 : i32
    scf.if %44 {
      %cst_18 = arith.constant dense<0.000000e+00> : vector<128xf32>
      %49 = vector.multi_reduction <add>, %41, %cst_18 [0] : vector<24x128xf32> to vector<128xf32>
      %50 = vector.shape_cast %49 : vector<128xf32> to vector<1x128xf32>
      %cst_19 = arith.constant 0.0416666679 : f32
      %51 = vector.broadcast %cst_19 : f32 to vector<1x128xf32>
      %52 = arith.mulf %50, %51 : vector<1x128xf32>
      %53 = vector.broadcast %52 : vector<1x128xf32> to vector<24x128xf32>
      %54 = arith.subf %41, %53 : vector<24x128xf32>
      %55 = arith.mulf %54, %54 : vector<24x128xf32>
      %cst_20 = arith.constant dense<0.000000e+00> : vector<128xf32>
      %56 = vector.multi_reduction <add>, %55, %cst_20 [0] : vector<24x128xf32> to vector<128xf32>
      %57 = vector.shape_cast %56 : vector<128xf32> to vector<1x128xf32>
      %c24_i32 = arith.constant 24 : i32
      %58 = arith.muli %arg0, %c24_i32 : i32
      %59 = arith.sitofp %58 : i32 to f32
      %cst_21 = arith.constant 2.400000e+01 : f32
      %60 = arith.addf %59, %cst_21 : f32
      %c0_22 = arith.constant 0 : index
      %c0_23 = arith.constant 0 : index
      %61 = vector.load %arg7[%c0_22, %c0_23] : memref<1x128xf32, #tpu.memory_space<vmem>>, vector<1x128xf32>
      %62 = arith.subf %52, %61 : vector<1x128xf32>
      %cst_24 = arith.constant 2.400000e+01 : f32
      %63 = arith.divf %cst_24, %60 : f32
      %64 = vector.broadcast %63 : f32 to vector<1x128xf32>
      %65 = arith.mulf %62, %64 : vector<1x128xf32>
      %66 = arith.addf %61, %65 : vector<1x128xf32>
      %c0_25 = arith.constant 0 : index
      %c0_26 = arith.constant 0 : index
      %67 = vector.load %arg7[%c0_25, %c0_26] : memref<1x128xf32, #tpu.memory_space<vmem>>, vector<1x128xf32>
      tpu.vector_store %arg7[%c0_25, %c0_26], %66 {strides = array<i32>} : memref<1x128xf32, #tpu.memory_space<vmem>>, vector<1x128xf32>,
      %c0_27 = arith.constant 0 : index
      %c0_28 = arith.constant 0 : index
      %68 = vector.load %arg8[%c0_27, %c0_28] : memref<1x128xf32, #tpu.memory_space<vmem>>, vector<1x128xf32>
      %69 = arith.addf %68, %57 : vector<1x128xf32>
      %70 = arith.mulf %62, %62 : vector<1x128xf32>
      %cst_29 = arith.constant 2.400000e+01 : f32
      %71 = arith.mulf %59, %cst_29 : f32
      %72 = arith.divf %71, %60 : f32
      %73 = vector.broadcast %72 : f32 to vector<1x128xf32>
      %74 = arith.mulf %70, %73 : vector<1x128xf32>
      %75 = arith.addf %69, %74 : vector<1x128xf32>
      %c0_30 = arith.constant 0 : index
      %c0_31 = arith.constant 0 : index
      %76 = vector.load %arg8[%c0_30, %c0_31] : memref<1x128xf32, #tpu.memory_space<vmem>>, vector<1x128xf32>
      tpu.vector_store %arg8[%c0_30, %c0_31], %75 {strides = array<i32>} : memref<1x128xf32, #tpu.memory_space<vmem>>, vector<1x128xf32>,
    } else {
    }
    %45 = arith.extui %0 : i1 to i32
    %c0_i32_16 = arith.constant 0 : i32
    %46 = arith.cmpi ne, %45, %c0_i32_16 : i32
    scf.if %46 {
      %c24_i32 = arith.constant 24 : i32
      %49 = arith.muli %arg0, %c24_i32 : i32
      %c18_i32 = arith.constant 18 : i32
      %50 = arith.subi %c18_i32, %49 : i32
      %51 = arith.sitofp %50 : i32 to f32
      %52 = tpu.iota {dimensions = array<i32: 0>} : vector<24x128xi32>
      %53 = vector.broadcast %50 : i32 to vector<24x128xi32>
      %54 = arith.cmpi slt, %52, %53 : vector<24x128xi32>
      %cst_18 = arith.constant 0.000000e+00 : f32
      %55 = vector.broadcast %cst_18 : f32 to vector<24x128xf32>
      %56 = arith.select %54, %41, %55 : vector<24x128xi1>, vector<24x128xf32>
      %cst_19 = arith.constant dense<0.000000e+00> : vector<128xf32>
      %57 = vector.multi_reduction <add>, %56, %cst_19 [0] : vector<24x128xf32> to vector<128xf32>
      %58 = vector.shape_cast %57 : vector<128xf32> to vector<1x128xf32>
      %59 = vector.broadcast %51 : f32 to vector<1x128xf32>
      %60 = arith.divf %58, %59 : vector<1x128xf32>
      %61 = vector.broadcast %60 : vector<1x128xf32> to vector<24x128xf32>
      %62 = arith.subf %41, %61 : vector<24x128xf32>
      %cst_20 = arith.constant 0.000000e+00 : f32
      %63 = vector.broadcast %cst_20 : f32 to vector<24x128xf32>
      %64 = arith.select %54, %62, %63 : vector<24x128xi1>, vector<24x128xf32>
      %65 = arith.mulf %64, %64 : vector<24x128xf32>
      %cst_21 = arith.constant dense<0.000000e+00> : vector<128xf32>
      %66 = vector.multi_reduction <add>, %65, %cst_21 [0] : vector<24x128xf32> to vector<128xf32>
      %67 = vector.shape_cast %66 : vector<128xf32> to vector<1x128xf32>
      %c24_i32_22 = arith.constant 24 : i32
      %68 = arith.muli %arg0, %c24_i32_22 : i32
      %69 = arith.sitofp %68 : i32 to f32
      %70 = arith.addf %69, %51 : f32
      %c0_23 = arith.constant 0 : index
      %c0_24 = arith.constant 0 : index
      %71 = vector.load %arg7[%c0_23, %c0_24] : memref<1x128xf32, #tpu.memory_space<vmem>>, vector<1x128xf32>
      %72 = arith.subf %60, %71 : vector<1x128xf32>
      %73 = arith.divf %51, %70 : f32
      %74 = vector.broadcast %73 : f32 to vector<1x128xf32>
      %75 = arith.mulf %72, %74 : vector<1x128xf32>
      %76 = arith.addf %71, %75 : vector<1x128xf32>
      %c0_25 = arith.constant 0 : index
      %c0_26 = arith.constant 0 : index
      %77 = vector.load %arg7[%c0_25, %c0_26] : memref<1x128xf32, #tpu.memory_space<vmem>>, vector<1x128xf32>
      tpu.vector_store %arg7[%c0_25, %c0_26], %76 {strides = array<i32>} : memref<1x128xf32, #tpu.memory_space<vmem>>, vector<1x128xf32>,
      %c0_27 = arith.constant 0 : index
      %c0_28 = arith.constant 0 : index
      %78 = vector.load %arg8[%c0_27, %c0_28] : memref<1x128xf32, #tpu.memory_space<vmem>>, vector<1x128xf32>
      %79 = arith.addf %78, %67 : vector<1x128xf32>
      %80 = arith.mulf %72, %72 : vector<1x128xf32>
      %81 = arith.mulf %69, %51 : f32
      %82 = arith.divf %81, %70 : f32
      %83 = vector.broadcast %82 : f32 to vector<1x128xf32>
      %84 = arith.mulf %80, %83 : vector<1x128xf32>
      %85 = arith.addf %79, %84 : vector<1x128xf32>
      %c0_29 = arith.constant 0 : index
      %c0_30 = arith.constant 0 : index
      %86 = vector.load %arg8[%c0_29, %c0_30] : memref<1x128xf32, #tpu.memory_space<vmem>>, vector<1x128xf32>
      tpu.vector_store %arg8[%c0_29, %c0_30], %85 {strides = array<i32>} : memref<1x128xf32, #tpu.memory_space<vmem>>, vector<1x128xf32>,
    } else {
    }
    %47 = arith.extui %0 : i1 to i32
    %c0_i32_17 = arith.constant 0 : i32
    %48 = arith.cmpi ne, %47, %c0_i32_17 : i32
    scf.if %48 {
      %c0_18 = arith.constant 0 : index
      %c0_19 = arith.constant 0 : index
      %49 = vector.load %arg8[%c0_18, %c0_19] : memref<1x128xf32, #tpu.memory_space<vmem>>, vector<1x128xf32>
      %cst_20 = arith.constant 0.055555556 : f32
      %50 = vector.broadcast %cst_20 : f32 to vector<1x128xf32>
      %51 = arith.mulf %49, %50 : vector<1x128xf32>
      %cst_21 = arith.constant 0.000000e+00 : f32
      %52 = vector.broadcast %cst_21 : f32 to vector<1x128xf32>
      %53 = arith.maximumf %51, %52 : vector<1x128xf32>
      %54 = math.sqrt %53 : vector<1x128xf32>
      %55 = tpu.iota {dimensions = array<i32: 1>} : vector<1x128xi32>
      %c81_i32 = arith.constant 81 : i32
      %56 = vector.broadcast %c81_i32 : i32 to vector<1x128xi32>
      %57 = arith.cmpi slt, %55, %56 : vector<1x128xi32>
      %cst_22 = arith.constant 0.000000e+00 : f32
      %58 = vector.broadcast %cst_22 : f32 to vector<1x128xf32>
      %59 = arith.select %57, %54, %58 : vector<1x128xi1>, vector<1x128xf32>
      %c0_23 = arith.constant 0 : index
      %c0_24 = arith.constant 0 : index
      %60 = vector.load %arg4[%c0_23, %c0_24] : memref<128x32xf32, #tpu.memory_space<vmem>>, vector<128x32xf32>
      %cst_25 = arith.constant dense<0.000000e+00> : vector<1x32xf32>
      %61 = tpu.matmul %59, %60, %cst_25 {dimension_numbers = #tpu.dot_dimension_numbers<[1], [0], [0], [1], [0, 0, 1, 1], [], []>} : vector<1x128xf32>, vector<128x32xf32>, vector<1x32xf32> -> vector<1x32xf32>
      %c0_26 = arith.constant 0 : index
      %c0_27 = arith.constant 0 : index
      %62 = vector.load %arg5[%c0_26, %c0_27] : memref<1x32xf32, #tpu.memory_space<vmem>>, vector<1x32xf32>
      %63 = arith.mulf %61, %62 : vector<1x32xf32>
      %64 = vector.shape_cast %63 : vector<1x32xf32> to vector<1x1x32xf32>
      %cst_28 = arith.constant dense<0.000000e+00> : vector<1xf32>
      %65 = vector.multi_reduction <add>, %64, %cst_28 [1, 2] : vector<1x1x32xf32> to vector<1xf32>
      %66 = vector.shape_cast %65 : vector<1xf32> to vector<1x1x1xf32>
      %67 = vector.extract %66[0, 0, 0] : f32 from vector<1x1x1xf32>
      %68 = arith.mulf %61, %61 : vector<1x32xf32>
      %69 = vector.shape_cast %68 : vector<1x32xf32> to vector<1x1x32xf32>
      %cst_29 = arith.constant dense<0.000000e+00> : vector<1xf32>
      %70 = vector.multi_reduction <add>, %69, %cst_29 [1, 2] : vector<1x1x32xf32> to vector<1xf32>
      %71 = vector.shape_cast %70 : vector<1xf32> to vector<1x1x1xf32>
      %72 = vector.extract %71[0, 0, 0] : f32 from vector<1x1x1xf32>
      %73 = arith.mulf %62, %62 : vector<1x32xf32>
      %74 = vector.shape_cast %73 : vector<1x32xf32> to vector<1x1x32xf32>
      %cst_30 = arith.constant dense<0.000000e+00> : vector<1xf32>
      %75 = vector.multi_reduction <add>, %74, %cst_30 [1, 2] : vector<1x1x32xf32> to vector<1xf32>
      %76 = vector.shape_cast %75 : vector<1xf32> to vector<1x1x1xf32>
      %77 = vector.extract %76[0, 0, 0] : f32 from vector<1x1x1xf32>
      %cst_31 = arith.constant 1.000000e-16 : f32
      %78 = arith.maximumf %72, %cst_31 : f32
      %79 = math.rsqrt %78 : f32
      %80 = arith.mulf %67, %79 : f32
      %cst_32 = arith.constant 1.000000e-16 : f32
      %81 = arith.maximumf %77, %cst_32 : f32
      %82 = math.rsqrt %81 : f32
      %83 = arith.mulf %80, %82 : f32
      %84 = vector.broadcast %83 : f32 to vector<1x1xf32>
      %c0_33 = arith.constant 0 : index
      %c0_34 = arith.constant 0 : index
      %85 = vector.load %arg6[%c0_33, %c0_34] : memref<1x1xf32, #tpu.memory_space<vmem>>, vector<1x1xf32>
      tpu.vector_store %arg6[%c0_33, %c0_34], %84 {strides = array<i32>} : memref<1x1xf32, #tpu.memory_space<vmem>>, vector<1x1xf32>,
    } else {
    }
    return
  }
  func.func @transform_0(%arg0: i32) -> (i32, i32) {
    %c0_i32 = arith.constant 0 : i32
    %c0_i32_0 = arith.constant 0 : i32
    return %arg0, %c0_i32 : i32, i32
  }
  func.func @transform_1(%arg0: i32) -> (i32, i32) {
    %c0_i32 = arith.constant 0 : i32
    %c0_i32_0 = arith.constant 0 : i32
    %c0_i32_1 = arith.constant 0 : i32
    return %c0_i32, %c0_i32_0 : i32, i32
  }
  func.func @transform_2(%arg0: i32) -> (i32, i32) {
    %c0_i32 = arith.constant 0 : i32
    %c0_i32_0 = arith.constant 0 : i32
    %c0_i32_1 = arith.constant 0 : i32
    return %c0_i32, %c0_i32_0 : i32, i32
  }
  func.func @transform_3(%arg0: i32) -> (i32, i32) {
    %c0_i32 = arith.constant 0 : i32
    %c0_i32_0 = arith.constant 0 : i32
    %c0_i32_1 = arith.constant 0 : i32
    return %c0_i32, %c0_i32_0 : i32, i32
  }
  func.func @transform_4(%arg0: i32) -> (i32, i32) {
    %c0_i32 = arith.constant 0 : i32
    %c0_i32_0 = arith.constant 0 : i32
    %c0_i32_1 = arith.constant 0 : i32
    return %c0_i32, %c0_i32_0 : i32, i32
  }
  func.func @transform_5(%arg0: i32) -> (i32, i32) {
    %c0_i32 = arith.constant 0 : i32
    %c0_i32_0 = arith.constant 0 : i32
    %c0_i32_1 = arith.constant 0 : i32
    return %c0_i32, %c0_i32_0 : i32, i32
  }
}

</mosaic_0001>

<llo_original>
// kernel: tpu_custom_call.1
$region0: #{tpu_custom_call.1}
  #allocation0 [shape = 'u32[]', space=smem, size = 0x4, offset = 0x4, fixed_abs, tag = 'smem constant byte address 0x4 - core index']
  #allocation1 [shape = 'u32[144,128]{1,0:T(1,128)}', space=vmem, size = 0x12000, scoped, tag = 'internal scratch']
  #allocation2 [shape = 'f32[1,128]{1,0:T(1,128)}', space=vmem, size = 0x200, scoped, tag = 'scratch operand']
  #allocation3 [shape = 'f32[1,128]{1,0:T(1,128)}', space=vmem, size = 0x200, scoped, tag = 'scratch operand']
  %s0 = inlined_call_operand.hbm [shape: bf16[24,400], index: 0, kind: input, shape index: {}]
  %s1 = inlined_call_operand.hbm [shape: bf16[400,512], index: 1, kind: input, shape index: {}]
  %s2 = inlined_call_operand.vmem [shape: bf16[256,128], index: 2, kind: input, shape index: {}]
  %s3 = inlined_call_operand.vmem [shape: f32[128,32], index: 3, kind: input, shape index: {}]
  %s4 = inlined_call_operand.vmem [shape: f32[1,32], index: 4, kind: input, shape index: {}]
  %s5 = inlined_call_operand.hbm [shape: f32[1,1], index: 5, kind: output, shape index: {}]
  %s6 = sld [smem:[#allocation0]]
  $region50: #{tpu_custom_call.1} parent=0
    _
  %s8 = ssub.s32 1, %s6
  %s9 = scalar_select 0, %s8, %s6
  $region1: #{tpu_custom_call.1} parent=0
    #allocation4 [shape = 'u8[24576]{0}', space=vmem, size = 0x6000, scoped, tag = 'input window, operand 0, single buffered']
    #allocation5 [shape = 's32[1]{0}', space=sflag, size = 0x4, scoped, tag = 'scoped memory for tpu_custom_call.1']
    #allocation6 [shape = 's32[1]{0}', space=sflag, size = 0x4, scoped, tag = 'scoped memory for tpu_custom_call.1']
    #allocation7 [shape = 'u8[409600]{0}', space=vmem, size = 0x64000, scoped, tag = 'input window, operand 1, single buffered']
    #allocation8 [shape = 's32[1]{0}', space=sflag, size = 0x4, scoped, tag = 'scoped memory for tpu_custom_call.1']
    #allocation9 [shape = 'u8[512]{0}', space=vmem, size = 0x400, scoped, tag = 'output window, operand 0, single buffered']
    %10 = vsyncpa [#allocation5], 0
    %11 = vsyncpa [#allocation8], 0
    %12 = vsyncpa [#allocation6], 0
    // Predicated region
    $region2: #{tpu_custom_call.1} parent=1 // pred_check
      _
    $region3: #{tpu_custom_call.1} parent=1 // pred_check_branch
      %14 = sbr.rel (0) target = $region5
    $region4: #{tpu_custom_call.1} parent=1 // pred_region
      %s16 = ssub.s32 768, 768
      %17 = vsyncadd [#allocation5], %s16
      %s18 = sshll.u32 [#allocation4], 4
      %s19 = int_to_ptr.vmem [resolvable:$true] %s18
      %24 = dma.hbm_to_vmem [thread:$0]  %s0, 768, %s19, [#allocation5], 256, 256, 16
    $region5: #{tpu_custom_call.1} parent=1 // pred_fallthru
      _
    // Predicated region
    $region6: #{tpu_custom_call.1} parent=1 // pred_check
      _
    $region7: #{tpu_custom_call.1} parent=1 // pred_check_branch
      %26 = sbr.rel (0) target = $region9
    $region8: #{tpu_custom_call.1} parent=1 // pred_region
      %s28 = ssub.s32 12800, 12800
      %29 = vsyncadd [#allocation8], %s28
      %s30 = sshll.u32 [#allocation7], 4
      %s31 = int_to_ptr.vmem [resolvable:$true] %s30
      %36 = dma.hbm_to_vmem [thread:$0]  %s1, 12800, %s31, [#allocation8], 256, 256, 16
    $region9: #{tpu_custom_call.1} parent=1 // pred_fallthru
      _
    // Predicated region
    $region10: #{tpu_custom_call.1} parent=1 // pred_check
      _
    $region11: #{tpu_custom_call.1} parent=1 // pred_check_branch
      %38 = sbr.rel (0) target = $region13
    $region12: #{tpu_custom_call.1} parent=1 // pred_region
      _
    $region13: #{tpu_custom_call.1} parent=1 // pred_fallthru
      _
    // Predicated region
    $region14: #{tpu_custom_call.1} parent=1 // pred_check
      _
    $region15: #{tpu_custom_call.1} parent=1 // pred_check_branch
      %40 = sbr.rel (0) target = $region17
    $region16: #{tpu_custom_call.1} parent=1 // pred_region
      _
    $region17: #{tpu_custom_call.1} parent=1 // pred_fallthru
      _
    // Predicated region
    $region18: #{tpu_custom_call.1} parent=1 // pred_check
      _
    $region19: #{tpu_custom_call.1} parent=1 // pred_check_branch
      %42 = sbr.rel (0) target = $region21
    $region20: #{tpu_custom_call.1} parent=1 // pred_region
      _
    $region21: #{tpu_custom_call.1} parent=1 // pred_fallthru
      _
    // Predicated region
    $region22: #{tpu_custom_call.1} parent=1 // pred_check
      _
    $region23: #{tpu_custom_call.1} parent=1 // pred_check_branch
      %44 = sbr.rel (0) target = $region25
    $region24: #{tpu_custom_call.1} parent=1 // pred_region
      %45 = dma.done [#allocation5], 768
    $region25: #{tpu_custom_call.1} parent=1 // pred_fallthru
      _
    // Predicated region
    $region26: #{tpu_custom_call.1} parent=1 // pred_check
      _
    $region27: #{tpu_custom_call.1} parent=1 // pred_check_branch
      %47 = sbr.rel (0) target = $region29
    $region28: #{tpu_custom_call.1} parent=1 // pred_region
      %48 = dma.done [#allocation8], 12800
    $region29: #{tpu_custom_call.1} parent=1 // pred_fallthru
      _
    %p50 = scmp.eq.s32.totalorder 0, 0
    // Predicated region
    $region30: #{tpu_custom_call.1} parent=1 // pred_check
      %p51 = pneg %p50
    $region31: #{tpu_custom_call.1} parent=1 // pred_check_branch
      %53 = sbr.rel (%p51) target = $region33
    $region32: #{tpu_custom_call.1} parent=1 // pred_region
      %54 = vst [vmem:[#allocation2] sm:$0x1] 0.0
      %55 = vst [vmem:[#allocation3] sm:$0x1] 0.0
    $region33: #{tpu_custom_call.1} parent=1 // pred_fallthru
      _
    %v56 = vld [vmem:[#allocation4] sm:$0xff]
    %v57 = vld [vmem:[#allocation4 + $0x8] sm:$0xff]
    %v58 = vld [vmem:[#allocation4 + $0x10] sm:$0xff]
    %v59 = vld [vmem:[#allocation4 + $0x18] sm:$0xff]
    %v60 = vld [vmem:[#allocation4 + $0x20] sm:$0xff]
    %v61 = vld [vmem:[#allocation4 + $0x28] sm:$0xff]
    %v62 = vunpack.c.l.bf16 %v56
    %v63 = vunpack.c.h.bf16 %v56
    %v64 = vunpack.c.l.bf16 %v57
    %v65 = vunpack.c.h.bf16 %v57
    %v66 = vunpack.c.l.bf16 %v58
    %v67 = vunpack.c.h.bf16 %v58
    %v68 = vunpack.c.l.bf16 %v59
    %v69 = vunpack.c.h.bf16 %v59
    %v70 = vunpack.c.l.bf16 %v60
    %v71 = vunpack.c.h.bf16 %v60
    %v72 = vunpack.c.l.bf16 %v61
    %v73 = vunpack.c.h.bf16 %v61
    %v74 = vadd.f32 %v62, %v63
    %v75 = vadd.f32 %v74, %v64
    %vm76 = vcmask 130048
    %v77 = vsel %vm76, %v65, 0.0
    %v78 = vadd.f32 %v75, %v77
    %79 = vadd.xlane.f32.xlu0 %v78
    %v80 = vpop.xlane.xlu0 %79
    %v81 = vadd.f32 %v66, %v67
    %v82 = vadd.f32 %v81, %v68
    %v83 = vsel %vm76, %v69, 0.0
    %v84 = vadd.f32 %v82, %v83
    %85 = vadd.xlane.f32.xlu0 %v84
    %v86 = vpop.xlane.xlu0 %85
    %v87 = vadd.f32 %v70, %v71
    %v88 = vadd.f32 %v87, %v72
    %v89 = vsel %vm76, %v73, 0.0
    %v90 = vadd.f32 %v88, %v89
    %91 = vadd.xlane.f32.xlu0 %v90
    %v92 = vpop.xlane.xlu0 %91
    %v93 = vmul.f32 %v62, %v62
    %v94 = vmul.f32 %v63, %v63
    %v95 = vmul.f32 %v64, %v64
    %v96 = vmul.f32 %v65, %v65
    %v97 = vmul.f32 %v66, %v66
    %v98 = vmul.f32 %v67, %v67
    %v99 = vmul.f32 %v68, %v68
    %v100 = vmul.f32 %v69, %v69
    %v101 = vmul.f32 %v70, %v70
    %v102 = vmul.f32 %v71, %v71
    %v103 = vmul.f32 %v72, %v72
    %v104 = vmul.f32 %v73, %v73
    %v105 = vadd.f32 %v93, %v94
    %v106 = vadd.f32 %v105, %v95
    %v107 = vsel %vm76, %v96, 0.0
    %v108 = vadd.f32 %v106, %v107
    %109 = vadd.xlane.f32.xlu0 %v108
    %v110 = vpop.xlane.xlu0 %109
    %v111 = vadd.f32 %v97, %v98
    %v112 = vadd.f32 %v111, %v99
    %v113 = vsel %vm76, %v100, 0.0
    %v114 = vadd.f32 %v112, %v113
    %115 = vadd.xlane.f32.xlu0 %v114
    %v116 = vpop.xlane.xlu0 %115
    %v117 = vadd.f32 %v101, %v102
    %v118 = vadd.f32 %v117, %v103
    %v119 = vsel %vm76, %v104, 0.0
    %v120 = vadd.f32 %v118, %v119
    %121 = vadd.xlane.f32.xlu0 %v120
    %v122 = vpop.xlane.xlu0 %121
    %v123 = vmul.f32 %v80, %v80
    %v124 = vmul.f32 %v86, %v86
    %v125 = vmul.f32 %v92, %v92
    %v126 = vmul.f32 %v123, 0.0025
    %v127 = vmul.f32 %v124, 0.0025
    %v128 = vmul.f32 %v125, 0.0025
    %v129 = vsub.f32 %v110, %v126
    %v130 = vsub.f32 %v116, %v127
    %v131 = vsub.f32 %v122, %v128
    %v132 = vmax.f32 %v129, 1.1920929e-07
    %v133 = vmax.f32 %v130, 1.1920929e-07
    %v134 = vmax.f32 %v131, 1.1920929e-07
    %v135 = vlog2.pop %v132
    %v136 = vmul.f32 %v135, 0.6931472
    %v137 = vlog2.pop %v133
    %v138 = vmul.f32 %v137, 0.6931472
    %v139 = vlog2.pop %v134
    %v140 = vmul.f32 %v139, 0.6931472
    %v141 = vld [vmem:[#allocation7] sm:$0xff]
    %v142 = vld [vmem:[#allocation7 + $0x8] sm:$0xff]
    %v143 = vld [vmem:[#allocation7 + $0x10] sm:$0xff]
    %v144 = vld [vmem:[#allocation7 + $0x18] sm:$0xff]
    %v145 = vld [vmem:[#allocation7 + $0x20] sm:$0xff]
    %v146 = vld [vmem:[#allocation7 + $0x28] sm:$0xff]
    %v147 = vld [vmem:[#allocation7 + $0x30] sm:$0xff]
    %v148 = vld [vmem:[#allocation7 + $0x38] sm:$0xff]
    %v149 = vld [vmem:[#allocation7 + $0x40] sm:$0xff]
    %v150 = vld [vmem:[#allocation7 + $0x48] sm:$0xff]
    %v151 = vld [vmem:[#allocation7 + $0x50] sm:$0xff]
    %v152 = vld [vmem:[#allocation7 + $0x58] sm:$0xff]
    %v153 = vld [vmem:[#allocation7 + $0x60] sm:$0xff]
    %v154 = vld [vmem:[#allocation7 + $0x68] sm:$0xff]
    %v155 = vld [vmem:[#allocation7 + $0x70] sm:$0xff]
    %v156 = vld [vmem:[#allocation7 + $0x78] sm:$0xff]
    %v157 = vld [vmem:[#allocation7 + $0x80] sm:$0xff]
    %v158 = vld [vmem:[#allocation7 + $0x88] sm:$0xff]
    %v159 = vld [vmem:[#allocation7 + $0x90] sm:$0xff]
    %v160 = vld [vmem:[#allocation7 + $0x98] sm:$0xff]
    %v161 = vld [vmem:[#allocation7 + $0xa0] sm:$0xff]
    %v162 = vld [vmem:[#allocation7 + $0xa8] sm:$0xff]
    %v163 = vld [vmem:[#allocation7 + $0xb0] sm:$0xff]
    %v164 = vld [vmem:[#allocation7 + $0xb8] sm:$0xff]
    %v165 = vld [vmem:[#allocation7 + $0xc0] sm:$0xff]
    %v166 = vld [vmem:[#allocation7 + $0xc8] sm:$0xff]
    %v167 = vld [vmem:[#allocation7 + $0xd0] sm:$0xff]
    %v168 = vld [vmem:[#allocation7 + $0xd8] sm:$0xff]
    %v169 = vld [vmem:[#allocation7 + $0xe0] sm:$0xff]
    %v170 = vld [vmem:[#allocation7 + $0xe8] sm:$0xff]
    %v171 = vld [vmem:[#allocation7 + $0xf0] sm:$0xff]
    %v172 = vld [vmem:[#allocation7 + $0xf8] sm:$0xff]
    %v173 = vld [vmem:[#allocation7 + $0x100] sm:$0xff]
    %v174 = vld [vmem:[#allocation7 + $0x108] sm:$0xff]
    %v175 = vld [vmem:[#allocation7 + $0x110] sm:$0xff]
    %v176 = vld [vmem:[#allocation7 + $0x118] sm:$0xff]
    %v177 = vld [vmem:[#allocation7 + $0x120] sm:$0xff]
    %v178 = vld [vmem:[#allocation7 + $0x128] sm:$0xff]
    %v179 = vld [vmem:[#allocation7 + $0x130] sm:$0xff]
    %v180 = vld [vmem:[#allocation7 + $0x138] sm:$0xff]
    %v181 = vld [vmem:[#allocation7 + $0x140] sm:$0xff]
    %v182 = vld [vmem:[#allocation7 + $0x148] sm:$0xff]
    %v183 = vld [vmem:[#allocation7 + $0x150] sm:$0xff]
    %v184 = vld [vmem:[#allocation7 + $0x158] sm:$0xff]
    %v185 = vld [vmem:[#allocation7 + $0x160] sm:$0xff]
    %v186 = vld [vmem:[#allocation7 + $0x168] sm:$0xff]
    %v187 = vld [vmem:[#allocation7 + $0x170] sm:$0xff]
    %v188 = vld [vmem:[#allocation7 + $0x178] sm:$0xff]
    %v189 = vld [vmem:[#allocation7 + $0x180] sm:$0xff]
    %v190 = vld [vmem:[#allocation7 + $0x188] sm:$0xff]
    %v191 = vld [vmem:[#allocation7 + $0x190] sm:$0xff]
    %v192 = vld [vmem:[#allocation7 + $0x198] sm:$0xff]
    %v193 = vld [vmem:[#allocation7 + $0x1a0] sm:$0xff]
    %v194 = vld [vmem:[#allocation7 + $0x1a8] sm:$0xff]
    %v195 = vld [vmem:[#allocation7 + $0x1b0] sm:$0xff]
    %v196 = vld [vmem:[#allocation7 + $0x1b8] sm:$0xff]
    %v197 = vld [vmem:[#allocation7 + $0x1c0] sm:$0xff]
    %v198 = vld [vmem:[#allocation7 + $0x1c8] sm:$0xff]
    %v199 = vld [vmem:[#allocation7 + $0x1d0] sm:$0xff]
    %v200 = vld [vmem:[#allocation7 + $0x1d8] sm:$0xff]
    %v201 = vld [vmem:[#allocation7 + $0x1e0] sm:$0xff]
    %v202 = vld [vmem:[#allocation7 + $0x1e8] sm:$0xff]
    %v203 = vld [vmem:[#allocation7 + $0x1f0] sm:$0xff]
    %v204 = vld [vmem:[#allocation7 + $0x1f8] sm:$0xff]
    %v205 = vld [vmem:[#allocation7 + $0x200] sm:$0xff]
    %v206 = vld [vmem:[#allocation7 + $0x208] sm:$0xff]
    %v207 = vld [vmem:[#allocation7 + $0x210] sm:$0xff]
    %v208 = vld [vmem:[#allocation7 + $0x218] sm:$0xff]
    %v209 = vld [vmem:[#allocation7 + $0x220] sm:$0xff]
    %v210 = vld [vmem:[#allocation7 + $0x228] sm:$0xff]
    %v211 = vld [vmem:[#allocation7 + $0x230] sm:$0xff]
    %v212 = vld [vmem:[#allocation7 + $0x238] sm:$0xff]
    %v213 = vld [vmem:[#allocation7 + $0x240] sm:$0xff]
    %v214 = vld [vmem:[#allocation7 + $0x248] sm:$0xff]
    %v215 = vld [vmem:[#allocation7 + $0x250] sm:$0xff]
    %v216 = vld [vmem:[#allocation7 + $0x258] sm:$0xff]
    %v217 = vld [vmem:[#allocation7 + $0x260] sm:$0xff]
    %v218 = vld [vmem:[#allocation7 + $0x268] sm:$0xff]
    %v219 = vld [vmem:[#allocation7 + $0x270] sm:$0xff]
    %v220 = vld [vmem:[#allocation7 + $0x278] sm:$0xff]
    %v221 = vld [vmem:[#allocation7 + $0x280] sm:$0xff]
    %v222 = vld [vmem:[#allocation7 + $0x288] sm:$0xff]
    %v223 = vld [vmem:[#allocation7 + $0x290] sm:$0xff]
    %v224 = vld [vmem:[#allocation7 + $0x298] sm:$0xff]
    %v225 = vld [vmem:[#allocation7 + $0x2a0] sm:$0xff]
    %v226 = vld [vmem:[#allocation7 + $0x2a8] sm:$0xff]
    %v227 = vld [vmem:[#allocation7 + $0x2b0] sm:$0xff]
    %v228 = vld [vmem:[#allocation7 + $0x2b8] sm:$0xff]
    %v229 = vld [vmem:[#allocation7 + $0x2c0] sm:$0xff]
    %v230 = vld [vmem:[#allocation7 + $0x2c8] sm:$0xff]
    %v231 = vld [vmem:[#allocation7 + $0x2d0] sm:$0xff]
    %v232 = vld [vmem:[#allocation7 + $0x2d8] sm:$0xff]
    %v233 = vld [vmem:[#allocation7 + $0x2e0] sm:$0xff]
    %v234 = vld [vmem:[#allocation7 + $0x2e8] sm:$0xff]
    %v235 = vld [vmem:[#allocation7 + $0x2f0] sm:$0xff]
    %v236 = vld [vmem:[#allocation7 + $0x2f8] sm:$0xff]
    %v237 = vld [vmem:[#allocation7 + $0x300] sm:$0xff]
    %v238 = vld [vmem:[#allocation7 + $0x308] sm:$0xff]
    %v239 = vld [vmem:[#allocation7 + $0x310] sm:$0xff]
    %v240 = vld [vmem:[#allocation7 + $0x318] sm:$0xff]
    %v247 = vunpack.c.l.b16 %v56
    %v248 = vunpack.c.h.b16 %v56
    %v249 = vunpack.c.l.b16 %v57
    %v250 = vunpack.c.h.b16 %v57
    %v251 = vunpack.c.l.b16 %v58
    %v252 = vunpack.c.h.b16 %v58
    %v253 = vunpack.c.l.b16 %v59
    %v254 = vunpack.c.h.b16 %v59
    %v255 = vunpack.c.l.b16 %v60
    %v256 = vunpack.c.h.b16 %v60
    %v257 = vunpack.c.l.b16 %v61
    %v258 = vunpack.c.h.b16 %v61
    %v259 = vpack.c.b16 %v251, %v247
    %v260 = vpack.c.b16 %v252, %v248
    %v261 = vpack.c.b16 %v253, %v249
    %v262 = vpack.c.b16 %v254, %v250
    %v263 = vpack.c.b16 %v255, %v255
    %v264 = vpack.c.b16 %v256, %v256
    %v265 = vpack.c.b16 %v257, %v257
    %v266 = vpack.c.b16 %v258, %v258
    %v373 = vunpack.c.l.b16 %v141
    %v374 = vunpack.c.h.b16 %v141
    %v375 = vunpack.c.l.b16 %v142
    %v376 = vunpack.c.h.b16 %v142
    %v377 = vunpack.c.l.b16 %v143
    %v378 = vunpack.c.h.b16 %v143
    %v379 = vunpack.c.l.b16 %v144
    %v380 = vunpack.c.h.b16 %v144
    %v381 = vunpack.c.l.b16 %v145
    %v382 = vunpack.c.h.b16 %v145
    %v383 = vunpack.c.l.b16 %v146
    %v384 = vunpack.c.h.b16 %v146
    %v385 = vunpack.c.l.b16 %v147
    %v386 = vunpack.c.h.b16 %v147
    %v387 = vunpack.c.l.b16 %v148
    %v388 = vunpack.c.h.b16 %v148
    %v389 = vunpack.c.l.b16 %v149
    %v390 = vunpack.c.h.b16 %v149
    %v391 = vunpack.c.l.b16 %v150
    %v392 = vunpack.c.h.b16 %v150
    %v393 = vunpack.c.l.b16 %v151
    %v394 = vunpack.c.h.b16 %v151
    %v395 = vunpack.c.l.b16 %v152
    %v396 = vunpack.c.h.b16 %v152
    %v397 = vunpack.c.l.b16 %v153
    %v398 = vunpack.c.h.b16 %v153
    %v399 = vunpack.c.l.b16 %v154
    %v400 = vunpack.c.h.b16 %v154
    %v401 = vunpack.c.l.b16 %v155
    %v402 = vunpack.c.h.b16 %v155
    %v403 = vunpack.c.l.b16 %v156
    %v404 = vunpack.c.h.b16 %v156
    %v405 = vunpack.c.l.b16 %v157
    %v406 = vunpack.c.h.b16 %v157
    %v407 = vunpack.c.l.b16 %v158
    %v408 = vunpack.c.h.b16 %v158
    %v409 = vunpack.c.l.b16 %v159
    %v410 = vunpack.c.h.b16 %v159
    %v411 = vunpack.c.l.b16 %v160
    %v412 = vunpack.c.h.b16 %v160
    %v413 = vunpack.c.l.b16 %v161
    %v414 = vunpack.c.h.b16 %v161
    %v415 = vunpack.c.l.b16 %v162
    %v416 = vunpack.c.h.b16 %v162
    %v417 = vunpack.c.l.b16 %v163
    %v418 = vunpack.c.h.b16 %v163
    %v419 = vunpack.c.l.b16 %v164
    %v420 = vunpack.c.h.b16 %v164
    %v421 = vunpack.c.l.b16 %v165
    %v422 = vunpack.c.h.b16 %v165
    %v423 = vunpack.c.l.b16 %v166
    %v424 = vunpack.c.h.b16 %v166
    %v425 = vunpack.c.l.b16 %v167
    %v426 = vunpack.c.h.b16 %v167
    %v427 = vunpack.c.l.b16 %v168
    %v428 = vunpack.c.h.b16 %v168
    %v429 = vunpack.c.l.b16 %v169
    %v430 = vunpack.c.h.b16 %v169
    %v431 = vunpack.c.l.b16 %v170
    %v432 = vunpack.c.h.b16 %v170
    %v433 = vunpack.c.l.b16 %v171
    %v434 = vunpack.c.h.b16 %v171
    %v435 = vunpack.c.l.b16 %v172
    %v436 = vunpack.c.h.b16 %v172
    %v437 = vunpack.c.l.b16 %v173
    %v438 = vunpack.c.h.b16 %v173
    %v439 = vunpack.c.l.b16 %v174
    %v440 = vunpack.c.h.b16 %v174
    %v441 = vunpack.c.l.b16 %v175
    %v442 = vunpack.c.h.b16 %v175
    %v443 = vunpack.c.l.b16 %v176
    %v444 = vunpack.c.h.b16 %v176
    %v445 = vunpack.c.l.b16 %v177
    %v446 = vunpack.c.h.b16 %v177
    %v447 = vunpack.c.l.b16 %v178
    %v448 = vunpack.c.h.b16 %v178
    %v449 = vunpack.c.l.b16 %v179
    %v450 = vunpack.c.h.b16 %v179
    %v451 = vunpack.c.l.b16 %v180
    %v452 = vunpack.c.h.b16 %v180
    %v453 = vunpack.c.l.b16 %v181
    %v454 = vunpack.c.h.b16 %v181
    %v455 = vunpack.c.l.b16 %v182
    %v456 = vunpack.c.h.b16 %v182
    %v457 = vunpack.c.l.b16 %v183
    %v458 = vunpack.c.h.b16 %v183
    %v459 = vunpack.c.l.b16 %v184
    %v460 = vunpack.c.h.b16 %v184
    %v461 = vunpack.c.l.b16 %v185
    %v462 = vunpack.c.h.b16 %v185
    %v463 = vunpack.c.l.b16 %v186
    %v464 = vunpack.c.h.b16 %v186
    %v465 = vunpack.c.l.b16 %v187
    %v466 = vunpack.c.h.b16 %v187
    %v467 = vunpack.c.l.b16 %v188
    %v468 = vunpack.c.h.b16 %v188
    %v469 = vunpack.c.l.b16 %v189
    %v470 = vunpack.c.h.b16 %v189
    %v471 = vunpack.c.l.b16 %v190
    %v472 = vunpack.c.h.b16 %v190
    %v473 = vunpack.c.l.b16 %v191
    %v474 = vunpack.c.h.b16 %v191
    %v475 = vunpack.c.l.b16 %v192
    %v476 = vunpack.c.h.b16 %v192
    %v477 = vunpack.c.l.b16 %v193
    %v478 = vunpack.c.h.b16 %v193
    %v479 = vunpack.c.l.b16 %v194
    %v480 = vunpack.c.h.b16 %v194
    %v481 = vunpack.c.l.b16 %v195
    %v482 = vunpack.c.h.b16 %v195
    %v483 = vunpack.c.l.b16 %v196
    %v484 = vunpack.c.h.b16 %v196
    %v485 = vunpack.c.l.b16 %v197
    %v486 = vunpack.c.h.b16 %v197
    %v487 = vunpack.c.l.b16 %v198
    %v488 = vunpack.c.h.b16 %v198
    %v489 = vunpack.c.l.b16 %v199
    %v490 = vunpack.c.h.b16 %v199
    %v491 = vunpack.c.l.b16 %v200
    %v492 = vunpack.c.h.b16 %v200
    %v493 = vunpack.c.l.b16 %v201
    %v494 = vunpack.c.h.b16 %v201
    %v495 = vunpack.c.l.b16 %v202
    %v496 = vunpack.c.h.b16 %v202
    %v497 = vunpack.c.l.b16 %v203
    %v498 = vunpack.c.h.b16 %v203
    %v499 = vunpack.c.l.b16 %v204
    %v500 = vunpack.c.h.b16 %v204
    %v501 = vunpack.c.l.b16 %v205
    %v502 = vunpack.c.h.b16 %v205
    %v503 = vunpack.c.l.b16 %v206
    %v504 = vunpack.c.h.b16 %v206
    %v505 = vunpack.c.l.b16 %v207
    %v506 = vunpack.c.h.b16 %v207
    %v507 = vunpack.c.l.b16 %v208
    %v508 = vunpack.c.h.b16 %v208
    %v509 = vunpack.c.l.b16 %v209
    %v510 = vunpack.c.h.b16 %v209
    %v511 = vunpack.c.l.b16 %v210
    %v512 = vunpack.c.h.b16 %v210
    %v513 = vunpack.c.l.b16 %v211
    %v514 = vunpack.c.h.b16 %v211
    %v515 = vunpack.c.l.b16 %v212
    %v516 = vunpack.c.h.b16 %v212
    %v517 = vunpack.c.l.b16 %v213
    %v518 = vunpack.c.h.b16 %v213
    %v519 = vunpack.c.l.b16 %v214
    %v520 = vunpack.c.h.b16 %v214
    %v521 = vunpack.c.l.b16 %v215
    %v522 = vunpack.c.h.b16 %v215
    %v523 = vunpack.c.l.b16 %v216
    %v524 = vunpack.c.h.b16 %v216
    %v525 = vunpack.c.l.b16 %v217
    %v526 = vunpack.c.h.b16 %v217
    %v527 = vunpack.c.l.b16 %v218
    %v528 = vunpack.c.h.b16 %v218
    %v529 = vunpack.c.l.b16 %v219
    %v530 = vunpack.c.h.b16 %v219
    %v531 = vunpack.c.l.b16 %v220
    %v532 = vunpack.c.h.b16 %v220
    %v533 = vunpack.c.l.b16 %v221
    %v534 = vunpack.c.h.b16 %v221
    %v535 = vunpack.c.l.b16 %v222
    %v536 = vunpack.c.h.b16 %v222
    %v537 = vunpack.c.l.b16 %v223
    %v538 = vunpack.c.h.b16 %v223
    %v539 = vunpack.c.l.b16 %v224
    %v540 = vunpack.c.h.b16 %v224
    %v541 = vunpack.c.l.b16 %v225
    %v542 = vunpack.c.h.b16 %v225
    %v543 = vunpack.c.l.b16 %v226
    %v544 = vunpack.c.h.b16 %v226
    %v545 = vunpack.c.l.b16 %v227
    %v546 = vunpack.c.h.b16 %v227
    %v547 = vunpack.c.l.b16 %v228
    %v548 = vunpack.c.h.b16 %v228
    %v549 = vunpack.c.l.b16 %v229
    %v550 = vunpack.c.h.b16 %v229
    %v551 = vunpack.c.l.b16 %v230
    %v552 = vunpack.c.h.b16 %v230
    %v553 = vunpack.c.l.b16 %v231
    %v554 = vunpack.c.h.b16 %v231
    %v555 = vunpack.c.l.b16 %v232
    %v556 = vunpack.c.h.b16 %v232
    %v557 = vunpack.c.l.b16 %v233
    %v558 = vunpack.c.h.b16 %v233
    %v559 = vunpack.c.l.b16 %v234
    %v560 = vunpack.c.h.b16 %v234
    %v561 = vunpack.c.l.b16 %v235
    %v562 = vunpack.c.h.b16 %v235
    %v563 = vunpack.c.l.b16 %v236
    %v564 = vunpack.c.h.b16 %v236
    %v565 = vunpack.c.l.b16 %v237
    %v566 = vunpack.c.h.b16 %v237
    %v567 = vunpack.c.l.b16 %v238
    %v568 = vunpack.c.h.b16 %v238
    %v569 = vunpack.c.l.b16 %v239
    %v570 = vunpack.c.h.b16 %v239
    %v571 = vunpack.c.l.b16 %v240
    %v572 = vunpack.c.h.b16 %v240
    %v573 = vpack.c.b16 %v377, %v373
    %v574 = vpack.c.b16 %v378, %v374
    %v575 = vpack.c.b16 %v379, %v375
    %v576 = vpack.c.b16 %v380, %v376
    %v577 = vpack.c.b16 %v385, %v381
    %v578 = vpack.c.b16 %v386, %v382
    %v579 = vpack.c.b16 %v387, %v383
    %v580 = vpack.c.b16 %v388, %v384
    %v581 = vpack.c.b16 %v393, %v389
    %v582 = vpack.c.b16 %v394, %v390
    %v583 = vpack.c.b16 %v395, %v391
    %v584 = vpack.c.b16 %v396, %v392
    %v585 = vpack.c.b16 %v401, %v397
    %v586 = vpack.c.b16 %v402, %v398
    %v587 = vpack.c.b16 %v403, %v399
    %v588 = vpack.c.b16 %v404, %v400
    %v589 = vpack.c.b16 %v409, %v405
    %v590 = vpack.c.b16 %v410, %v406
    %v591 = vpack.c.b16 %v411, %v407
    %v592 = vpack.c.b16 %v412, %v408
    %v593 = vpack.c.b16 %v417, %v413
    %v594 = vpack.c.b16 %v418, %v414
    %v595 = vpack.c.b16 %v419, %v415
    %v596 = vpack.c.b16 %v420, %v416
    %v597 = vpack.c.b16 %v425, %v421
    %v598 = vpack.c.b16 %v426, %v422
    %v599 = vpack.c.b16 %v427, %v423
    %v600 = vpack.c.b16 %v428, %v424
    %v601 = vpack.c.b16 %v433, %v429
    %v602 = vpack.c.b16 %v434, %v430
    %v603 = vpack.c.b16 %v435, %v431
    %v604 = vpack.c.b16 %v436, %v432
    %v605 = vpack.c.b16 %v441, %v437
    %v606 = vpack.c.b16 %v442, %v438
    %v607 = vpack.c.b16 %v443, %v439
    %v608 = vpack.c.b16 %v444, %v440
    %v609 = vpack.c.b16 %v449, %v445
    %v610 = vpack.c.b16 %v450, %v446
    %v611 = vpack.c.b16 %v451, %v447
    %v612 = vpack.c.b16 %v452, %v448
    %v613 = vpack.c.b16 %v457, %v453
    %v614 = vpack.c.b16 %v458, %v454
    %v615 = vpack.c.b16 %v459, %v455
    %v616 = vpack.c.b16 %v460, %v456
    %v617 = vpack.c.b16 %v465, %v461
    %v618 = vpack.c.b16 %v466, %v462
    %v619 = vpack.c.b16 %v467, %v463
    %v620 = vpack.c.b16 %v468, %v464
    %v621 = vpack.c.b16 %v473, %v469
    %v622 = vpack.c.b16 %v474, %v470
    %v623 = vpack.c.b16 %v475, %v471
    %v624 = vpack.c.b16 %v476, %v472
    %v625 = vpack.c.b16 %v481, %v477
    %v626 = vpack.c.b16 %v482, %v478
    %v627 = vpack.c.b16 %v483, %v479
    %v628 = vpack.c.b16 %v484, %v480
    %v629 = vpack.c.b16 %v489, %v485
    %v630 = vpack.c.b16 %v490, %v486
    %v631 = vpack.c.b16 %v491, %v487
    %v632 = vpack.c.b16 %v492, %v488
    %v633 = vpack.c.b16 %v497, %v493
    %v634 = vpack.c.b16 %v498, %v494
    %v635 = vpack.c.b16 %v499, %v495
    %v636 = vpack.c.b16 %v500, %v496
    %v637 = vpack.c.b16 %v505, %v501
    %v638 = vpack.c.b16 %v506, %v502
    %v639 = vpack.c.b16 %v507, %v503
    %v640 = vpack.c.b16 %v508, %v504
    %v641 = vpack.c.b16 %v513, %v509
    %v642 = vpack.c.b16 %v514, %v510
    %v643 = vpack.c.b16 %v515, %v511
    %v644 = vpack.c.b16 %v516, %v512
    %v645 = vpack.c.b16 %v521, %v517
    %v646 = vpack.c.b16 %v522, %v518
    %v647 = vpack.c.b16 %v523, %v519
    %v648 = vpack.c.b16 %v524, %v520
    %v649 = vpack.c.b16 %v529, %v525
    %v650 = vpack.c.b16 %v530, %v526
    %v651 = vpack.c.b16 %v531, %v527
    %v652 = vpack.c.b16 %v532, %v528
    %v653 = vpack.c.b16 %v537, %v533
    %v654 = vpack.c.b16 %v538, %v534
    %v655 = vpack.c.b16 %v539, %v535
    %v656 = vpack.c.b16 %v540, %v536
    %v657 = vpack.c.b16 %v545, %v541
    %v658 = vpack.c.b16 %v546, %v542
    %v659 = vpack.c.b16 %v547, %v543
    %v660 = vpack.c.b16 %v548, %v544
    %v661 = vpack.c.b16 %v553, %v549
    %v662 = vpack.c.b16 %v554, %v550
    %v663 = vpack.c.b16 %v555, %v551
    %v664 = vpack.c.b16 %v556, %v552
    %v665 = vpack.c.b16 %v561, %v557
    %v666 = vpack.c.b16 %v562, %v558
    %v667 = vpack.c.b16 %v563, %v559
    %v668 = vpack.c.b16 %v564, %v560
    %v669 = vpack.c.b16 %v569, %v565
    %v670 = vpack.c.b16 %v570, %v566
    %v671 = vpack.c.b16 %v571, %v567
    %v672 = vpack.c.b16 %v572, %v568
    %v774 = vsel %vm76, %v262, 0
    %v777 = vsel %vm76, %v266, 0
    %779 = vmatprep.subr.bf16.mxu0 %v574
    %780 = vmatpush1.bf16.msra.mxu0 %v573
    %781 = vmatprep.subr.bf16.mxu0 %v578
    %782 = vmatpush1.bf16.msra.mxu0 %v577
    %783 = vmatprep.subr.bf16.mxu0 %v582
    %784 = vmatpush1.bf16.msra.mxu0 %v581
    %785 = vmatprep.subr.bf16.mxu0 %v586
    %786 = vmatpush1.bf16.msra.mxu0 %v585
    %787 = vmatprep.subr.bf16.mxu0 %v590
    %788 = vmatpush1.bf16.msra.mxu0 %v589
    %789 = vmatprep.subr.bf16.mxu0 %v594
    %790 = vmatpush1.bf16.msra.mxu0 %v593
    %791 = vmatprep.subr.bf16.mxu0 %v598
    %792 = vmatpush1.bf16.msra.mxu0 %v597
    %793 = vmatprep.subr.bf16.mxu0 %v602
    %794 = vmatpush1.bf16.msra.mxu0 %v601
    %795 = vmatprep.subr.bf16.mxu0 %v606
    %796 = vmatpush1.bf16.msra.mxu0 %v605
    %797 = vmatprep.subr.bf16.mxu0 %v610
    %798 = vmatpush1.bf16.msra.mxu0 %v609
    %799 = vmatprep.subr.bf16.mxu0 %v614
    %800 = vmatpush1.bf16.msra.mxu0 %v613
    %801 = vmatprep.subr.bf16.mxu0 %v618
    %802 = vmatpush1.bf16.msra.mxu0 %v617
    %803 = vmatprep.subr.bf16.mxu0 %v622
    %804 = vmatpush1.bf16.msra.mxu0 %v621
    %805 = vmatprep.subr.bf16.mxu0 %v626
    %806 = vmatpush1.bf16.msra.mxu0 %v625
    %807 = vmatprep.subr.bf16.mxu0 %v630
    %808 = vmatpush1.bf16.msra.mxu0 %v629
    %809 = vmatprep.subr.bf16.mxu0 %v634
    %810 = vmatpush1.bf16.msra.mxu0 %v633
    %811 = vmatprep.mubr.bf16.mxu0 %v260
    %812 = vmatmul.mubr.bf16.gmra.mrb[0].mxu0 %v259
    %v813 = vpop.f32.mrb[0].mxu0
    %v814 = vadd.f32 0.0, %v813
    %v815 = vpop.f32.mrb[0].mxu0
    %v816 = vadd.f32 0.0, %v815
    %v817 = vpop.f32.mrb[0].mxu0
    %v818 = vadd.f32 0.0, %v817
    %v819 = vpop.f32.mrb[0].mxu0
    %v820 = vadd.f32 0.0, %v819
    %821 = vmatprep.mubr.bf16.mxu0 %v264
    %822 = vmatmul.mubr.bf16.gmra.mrb[0].mxu0 %v263
    %v823 = vpop.f32.mrb[0].mxu0
    %v824 = vadd.f32 0.0, %v823
    %v825 = vpop.f32.mrb[0].mxu0
    %v826 = vadd.f32 0.0, %v825
    %v827 = vpop.f32.mrb[0].mxu0
    %v828 = vpop.f32.mrb[0].mxu0
    %829 = vdwg.mxu0
    %830 = vmatprep.subr.bf16.mxu0 %v638
    %831 = vmatpush1.bf16.msra.mxu0 %v637
    %832 = vmatprep.subr.bf16.mxu0 %v642
    %833 = vmatpush1.bf16.msra.mxu0 %v641
    %834 = vmatprep.subr.bf16.mxu0 %v646
    %835 = vmatpush1.bf16.msra.mxu0 %v645
    %836 = vmatprep.subr.bf16.mxu0 %v650
    %837 = vmatpush1.bf16.msra.mxu0 %v649
    %838 = vmatprep.subr.bf16.mxu0 %v654
    %839 = vmatpush1.bf16.msra.mxu0 %v653
    %840 = vmatprep.subr.bf16.mxu0 %v658
    %841 = vmatpush1.bf16.msra.mxu0 %v657
    %842 = vmatprep.subr.bf16.mxu0 %v662
    %843 = vmatpush1.bf16.msra.mxu0 %v661
    %844 = vmatprep.subr.bf16.mxu0 %v666
    %845 = vmatpush1.bf16.msra.mxu0 %v665
    %846 = vmatprep.subr.bf16.mxu0 %v670
    %847 = vmatpush1.bf16.msra.mxu0 %v669
    %848 = vmatprep.subr.bf16.mxu0 0
    %849 = vmatpush1.bf16.msra.mxu0 0
    %850 = vmatprep.subr.bf16.mxu0 0
    %851 = vmatpush1.bf16.msra.mxu0 0
    %852 = vmatprep.subr.bf16.mxu0 0
    %853 = vmatpush1.bf16.msra.mxu0 0
    %854 = vmatprep.subr.bf16.mxu0 0
    %855 = vmatpush1.bf16.msra.mxu0 0
    %856 = vmatprep.subr.bf16.mxu0 0
    %857 = vmatpush1.bf16.msra.mxu0 0
    %858 = vmatprep.subr.bf16.mxu0 0
    %859 = vmatpush1.bf16.msra.mxu0 0
    %860 = vmatprep.subr.bf16.mxu0 0
    %861 = vmatpush1.bf16.msra.mxu0 0
    %862 = vmatprep.mubr.bf16.mxu0 %v774
    %863 = vmatmul.mubr.bf16.gmra.mrb[0].mxu0 %v261
    %v864 = vpop.f32.mrb[0].mxu0
    %v865 = vadd.f32 %v814, %v864
    %v866 = vpop.f32.mrb[0].mxu0
    %v867 = vadd.f32 %v816, %v866
    %v868 = vpop.f32.mrb[0].mxu0
    %v869 = vadd.f32 %v818, %v868
    %v870 = vpop.f32.mrb[0].mxu0
    %v871 = vadd.f32 %v820, %v870
    %872 = vmatprep.mubr.bf16.mxu0 %v777
    %873 = vmatmul.mubr.bf16.gmra.mrb[0].mxu0 %v265
    %v874 = vpop.f32.mrb[0].mxu0
    %v875 = vadd.f32 %v824, %v874
    %v876 = vpop.f32.mrb[0].mxu0
    %v877 = vadd.f32 %v826, %v876
    %v878 = vpop.f32.mrb[0].mxu0
    %v879 = vpop.f32.mrb[0].mxu0
    %880 = vdwg.mxu0
    %881 = vmatprep.subr.bf16.mxu0 %v576
    %882 = vmatpush1.bf16.msra.mxu0 %v575
    %883 = vmatprep.subr.bf16.mxu0 %v580
    %884 = vmatpush1.bf16.msra.mxu0 %v579
    %885 = vmatprep.subr.bf16.mxu0 %v584
    %886 = vmatpush1.bf16.msra.mxu0 %v583
    %887 = vmatprep.subr.bf16.mxu0 %v588
    %888 = vmatpush1.bf16.msra.mxu0 %v587
    %889 = vmatprep.subr.bf16.mxu0 %v592
    %890 = vmatpush1.bf16.msra.mxu0 %v591
    %891 = vmatprep.subr.bf16.mxu0 %v596
    %892 = vmatpush1.bf16.msra.mxu0 %v595
    %893 = vmatprep.subr.bf16.mxu0 %v600
    %894 = vmatpush1.bf16.msra.mxu0 %v599
    %895 = vmatprep.subr.bf16.mxu0 %v604
    %896 = vmatpush1.bf16.msra.mxu0 %v603
    %897 = vmatprep.subr.bf16.mxu0 %v608
    %898 = vmatpush1.bf16.msra.mxu0 %v607
    %899 = vmatprep.subr.bf16.mxu0 %v612
    %900 = vmatpush1.bf16.msra.mxu0 %v611
    %901 = vmatprep.subr.bf16.mxu0 %v616
    %902 = vmatpush1.bf16.msra.mxu0 %v615
    %903 = vmatprep.subr.bf16.mxu0 %v620
    %904 = vmatpush1.bf16.msra.mxu0 %v619
    %905 = vmatprep.subr.bf16.mxu0 %v624
    %906 = vmatpush1.bf16.msra.mxu0 %v623
    %907 = vmatprep.subr.bf16.mxu0 %v628
    %908 = vmatpush1.bf16.msra.mxu0 %v627
    %909 = vmatprep.subr.bf16.mxu0 %v632
    %910 = vmatpush1.bf16.msra.mxu0 %v631
    %911 = vmatprep.subr.bf16.mxu0 %v636
    %912 = vmatpush1.bf16.msra.mxu0 %v635
    %913 = vmatprep.mubr.bf16.mxu0 %v260
    %914 = vmatmul.mubr.bf16.gmra.mrb[0].mxu0 %v259
    %v915 = vpop.f32.mrb[0].mxu0
    %v916 = vadd.f32 0.0, %v915
    %v917 = vpop.f32.mrb[0].mxu0
    %v918 = vadd.f32 0.0, %v917
    %v919 = vpop.f32.mrb[0].mxu0
    %v920 = vadd.f32 0.0, %v919
    %v921 = vpop.f32.mrb[0].mxu0
    %v922 = vadd.f32 0.0, %v921
    %923 = vmatprep.mubr.bf16.mxu0 %v264
    %924 = vmatmul.mubr.bf16.gmra.mrb[0].mxu0 %v263
    %v925 = vpop.f32.mrb[0].mxu0
    %v926 = vadd.f32 0.0, %v925
    %v927 = vpop.f32.mrb[0].mxu0
    %v928 = vadd.f32 0.0, %v927
    %v929 = vpop.f32.mrb[0].mxu0
    %v930 = vpop.f32.mrb[0].mxu0
    %931 = vdwg.mxu0
    %932 = vmatprep.subr.bf16.mxu0 %v640
    %933 = vmatpush1.bf16.msra.mxu0 %v639
    %934 = vmatprep.subr.bf16.mxu0 %v644
    %935 = vmatpush1.bf16.msra.mxu0 %v643
    %936 = vmatprep.subr.bf16.mxu0 %v648
    %937 = vmatpush1.bf16.msra.mxu0 %v647
    %938 = vmatprep.subr.bf16.mxu0 %v652
    %939 = vmatpush1.bf16.msra.mxu0 %v651
    %940 = vmatprep.subr.bf16.mxu0 %v656
    %941 = vmatpush1.bf16.msra.mxu0 %v655
    %942 = vmatprep.subr.bf16.mxu0 %v660
    %943 = vmatpush1.bf16.msra.mxu0 %v659
    %944 = vmatprep.subr.bf16.mxu0 %v664
    %945 = vmatpush1.bf16.msra.mxu0 %v663
    %946 = vmatprep.subr.bf16.mxu0 %v668
    %947 = vmatpush1.bf16.msra.mxu0 %v667
    %948 = vmatprep.subr.bf16.mxu0 %v672
    %949 = vmatpush1.bf16.msra.mxu0 %v671
    %950 = vmatprep.subr.bf16.mxu0 0
    %951 = vmatpush1.bf16.msra.mxu0 0
    %952 = vmatprep.subr.bf16.mxu0 0
    %953 = vmatpush1.bf16.msra.mxu0 0
    %954 = vmatprep.subr.bf16.mxu0 0
    %955 = vmatpush1.bf16.msra.mxu0 0
    %956 = vmatprep.subr.bf16.mxu0 0
    %957 = vmatpush1.bf16.msra.mxu0 0
    %958 = vmatprep.subr.bf16.mxu0 0
    %959 = vmatpush1.bf16.msra.mxu0 0
    %960 = vmatprep.subr.bf16.mxu0 0
    %961 = vmatpush1.bf16.msra.mxu0 0
    %962 = vmatprep.subr.bf16.mxu0 0
    %963 = vmatpush1.bf16.msra.mxu0 0
    %964 = vmatprep.mubr.bf16.mxu0 %v774
    %965 = vmatmul.mubr.bf16.gmra.mrb[0].mxu0 %v261
    %v966 = vpop.f32.mrb[0].mxu0
    %v967 = vadd.f32 %v916, %v966
    %v968 = vpop.f32.mrb[0].mxu0
    %v969 = vadd.f32 %v918, %v968
    %v970 = vpop.f32.mrb[0].mxu0
    %v971 = vadd.f32 %v920, %v970
    %v972 = vpop.f32.mrb[0].mxu0
    %v973 = vadd.f32 %v922, %v972
    %974 = vmatprep.mubr.bf16.mxu0 %v777
    %975 = vmatmul.mubr.bf16.gmra.mrb[0].mxu0 %v265
    %v976 = vpop.f32.mrb[0].mxu0
    %v977 = vadd.f32 %v926, %v976
    %v978 = vpop.f32.mrb[0].mxu0
    %v979 = vadd.f32 %v928, %v978
    %v980 = vpop.f32.mrb[0].mxu0
    %v981 = vpop.f32.mrb[0].mxu0
    %982 = vdwg.mxu0
    %v983 = vmul.f32 %v865, %v865
    %v984 = vmul.f32 %v867, %v867
    %v985 = vmul.f32 %v869, %v869
    %v986 = vmul.f32 %v871, %v871
    %v987 = vmul.f32 %v875, %v875
    %v988 = vmul.f32 %v877, %v877
    %v989 = vmul.f32 %v967, %v967
    %v990 = vmul.f32 %v969, %v969
    %v991 = vmul.f32 %v971, %v971
    %v992 = vmul.f32 %v973, %v973
    %v993 = vmul.f32 %v977, %v977
    %v994 = vmul.f32 %v979, %v979
    %v995 = vadd.f32 %v983, %v989
    %v996 = vadd.f32 %v984, %v990
    %v997 = vadd.f32 %v985, %v991
    %v998 = vadd.f32 %v986, %v992
    %v999 = vadd.f32 %v987, %v993
    %v1000 = vadd.f32 %v988, %v994
    %v1001 = vpack.c.bf16 %v997, %v995
    %v1002 = vpack.c.bf16 %v998, %v996
    %v1003 = vpack.c.bf16 %v999, %v999
    %v1004 = vpack.c.bf16 %v1000, %v1000
    %v1005 = vld [vmem:[%s2] sm:$0xf]
    %v1006 = vld [vmem:[%s2 + $0x4] sm:$0xf]
    %v1007 = vld [vmem:[%s2 + $0x8] sm:$0xf]
    %v1008 = vld [vmem:[%s2 + $0xc] sm:$0xf]
    %v1009 = vld [vmem:[%s2 + $0x10] sm:$0xf]
    %v1010 = vld [vmem:[%s2 + $0x14] sm:$0xf]
    %v1011 = vld [vmem:[%s2 + $0x18] sm:$0xf]
    %v1012 = vld [vmem:[%s2 + $0x1c] sm:$0xf]
    %v1013 = vld [vmem:[%s2 + $0x20] sm:$0xf]
    %v1014 = vld [vmem:[%s2 + $0x24] sm:$0xf]
    %v1015 = vld [vmem:[%s2 + $0x28] sm:$0xf]
    %v1016 = vld [vmem:[%s2 + $0x2c] sm:$0xf]
    %v1017 = vld [vmem:[%s2 + $0x30] sm:$0xf]
    %v1018 = vld [vmem:[%s2 + $0x34] sm:$0xf]
    %v1019 = vld [vmem:[%s2 + $0x38] sm:$0xf]
    %v1020 = vld [vmem:[%s2 + $0x3c] sm:$0xf]
    %v1021 = vld [vmem:[%s2 + $0x40] sm:$0xf]
    %v1022 = vld [vmem:[%s2 + $0x44] sm:$0xf]
    %v1023 = vld [vmem:[%s2 + $0x48] sm:$0xf]
    %v1024 = vld [vmem:[%s2 + $0x4c] sm:$0xf]
    %v1025 = vld [vmem:[%s2 + $0x50] sm:$0xf]
    %v1026 = vld [vmem:[%s2 + $0x54] sm:$0xf]
    %v1027 = vld [vmem:[%s2 + $0x58] sm:$0xf]
    %v1028 = vld [vmem:[%s2 + $0x5c] sm:$0xf]
    %v1029 = vld [vmem:[%s2 + $0x60] sm:$0xf]
    %v1030 = vld [vmem:[%s2 + $0x64] sm:$0xf]
    %v1031 = vld [vmem:[%s2 + $0x68] sm:$0xf]
    %v1032 = vld [vmem:[%s2 + $0x6c] sm:$0xf]
    %v1033 = vld [vmem:[%s2 + $0x70] sm:$0xf]
    %v1034 = vld [vmem:[%s2 + $0x74] sm:$0xf]
    %v1035 = vld [vmem:[%s2 + $0x78] sm:$0xf]
    %v1036 = vld [vmem:[%s2 + $0x7c] sm:$0xf]
    %v1069 = vunpack.c.l.b16 %v1005
    %v1070 = vunpack.c.l.b16 %v1006
    %v1071 = vunpack.c.l.b16 %v1007
    %v1072 = vunpack.c.l.b16 %v1008
    %v1073 = vunpack.c.l.b16 %v1009
    %v1074 = vunpack.c.l.b16 %v1010
    %v1075 = vunpack.c.l.b16 %v1011
    %v1076 = vunpack.c.l.b16 %v1012
    %v1077 = vunpack.c.l.b16 %v1013
    %v1078 = vunpack.c.l.b16 %v1014
    %v1079 = vunpack.c.l.b16 %v1015
    %v1080 = vunpack.c.l.b16 %v1016
    %v1081 = vunpack.c.l.b16 %v1017
    %v1082 = vunpack.c.l.b16 %v1018
    %v1083 = vunpack.c.l.b16 %v1019
    %v1084 = vunpack.c.l.b16 %v1020
    %v1085 = vunpack.c.l.b16 %v1021
    %v1086 = vunpack.c.l.b16 %v1022
    %v1087 = vunpack.c.l.b16 %v1023
    %v1088 = vunpack.c.l.b16 %v1024
    %v1089 = vunpack.c.l.b16 %v1025
    %v1090 = vunpack.c.l.b16 %v1026
    %v1091 = vunpack.c.l.b16 %v1027
    %v1092 = vunpack.c.l.b16 %v1028
    %v1093 = vunpack.c.l.b16 %v1029
    %v1094 = vunpack.c.l.b16 %v1030
    %v1095 = vunpack.c.l.b16 %v1031
    %v1096 = vunpack.c.l.b16 %v1032
    %v1097 = vunpack.c.l.b16 %v1033
    %v1098 = vunpack.c.l.b16 %v1034
    %v1099 = vunpack.c.l.b16 %v1035
    %v1100 = vunpack.c.l.b16 %v1036
    %v1101 = vpack.c.b16 %v1070, %v1069
    %v1102 = vpack.c.b16 %v1072, %v1071
    %v1103 = vpack.c.b16 %v1074, %v1073
    %v1104 = vpack.c.b16 %v1076, %v1075
    %v1105 = vpack.c.b16 %v1078, %v1077
    %v1106 = vpack.c.b16 %v1080, %v1079
    %v1107 = vpack.c.b16 %v1082, %v1081
    %v1108 = vpack.c.b16 %v1084, %v1083
    %v1109 = vpack.c.b16 %v1086, %v1085
    %v1110 = vpack.c.b16 %v1088, %v1087
    %v1111 = vpack.c.b16 %v1090, %v1089
    %v1112 = vpack.c.b16 %v1092, %v1091
    %v1113 = vpack.c.b16 %v1094, %v1093
    %v1114 = vpack.c.b16 %v1096, %v1095
    %v1115 = vpack.c.b16 %v1098, %v1097
    %v1116 = vpack.c.b16 %v1100, %v1099
    %1133 = vmatprep.subr.bf16.mxu0 0
    %1134 = vmatpush1.bf16.msra.mxu0 %v1101
    %1135 = vmatprep.subr.bf16.mxu0 0
    %1136 = vmatpush1.bf16.msra.mxu0 %v1102
    %1137 = vmatprep.subr.bf16.mxu0 0
    %1138 = vmatpush1.bf16.msra.mxu0 %v1103
    %1139 = vmatprep.subr.bf16.mxu0 0
    %1140 = vmatpush1.bf16.msra.mxu0 %v1104
    %1141 = vmatprep.subr.bf16.mxu0 0
    %1142 = vmatpush1.bf16.msra.mxu0 %v1105
    %1143 = vmatprep.subr.bf16.mxu0 0
    %1144 = vmatpush1.bf16.msra.mxu0 %v1106
    %1145 = vmatprep.subr.bf16.mxu0 0
    %1146 = vmatpush1.bf16.msra.mxu0 %v1107
    %1147 = vmatprep.subr.bf16.mxu0 0
    %1148 = vmatpush1.bf16.msra.mxu0 %v1108
    %1149 = vmatprep.subr.bf16.mxu0 0
    %1150 = vmatpush1.bf16.msra.mxu0 %v1109
    %1151 = vmatprep.subr.bf16.mxu0 0
    %1152 = vmatpush1.bf16.msra.mxu0 %v1110
    %1153 = vmatprep.subr.bf16.mxu0 0
    %1154 = vmatpush1.bf16.msra.mxu0 %v1111
    %1155 = vmatprep.subr.bf16.mxu0 0
    %1156 = vmatpush1.bf16.msra.mxu0 %v1112
    %1157 = vmatprep.subr.bf16.mxu0 0
    %1158 = vmatpush1.bf16.msra.mxu0 %v1113
    %1159 = vmatprep.subr.bf16.mxu0 0
    %1160 = vmatpush1.bf16.msra.mxu0 %v1114
    %1161 = vmatprep.subr.bf16.mxu0 0
    %1162 = vmatpush1.bf16.msra.mxu0 %v1115
    %1163 = vmatprep.subr.bf16.mxu0 0
    %1164 = vmatpush1.bf16.msra.mxu0 %v1116
    %1165 = vmatprep.mubr.bf16.mxu0 %v1002
    %1166 = vmatmul.mubr.bf16.gmra.mrb[0].mxu0 %v1001
    %v1167 = vpop.f32.mrb[0].mxu0
    %v1168 = vadd.f32 0.0, %v1167
    %v1169 = vpop.f32.mrb[0].mxu0
    %v1170 = vpop.f32.mrb[0].mxu0
    %v1171 = vadd.f32 0.0, %v1170
    %v1172 = vpop.f32.mrb[0].mxu0
    %1173 = vmatprep.mubr.bf16.mxu0 %v1004
    %1174 = vmatmul.mubr.bf16.gmra.mrb[0].mxu0 %v1003
    %v1175 = vpop.f32.mrb[0].mxu0
    %v1176 = vadd.f32 0.0, %v1175
    %v1177 = vpop.f32.mrb[0].mxu0
    %v1178 = vpop.f32.mrb[0].mxu0
    %v1179 = vpop.f32.mrb[0].mxu0
    %1180 = vdwg.mxu0
    %v1181 = vmax.f32 %v1168, 1.1920929e-07
    %v1182 = vmax.f32 %v1171, 1.1920929e-07
    %v1183 = vmax.f32 %v1176, 1.1920929e-07
    %v1184 = vlog2.pop %v1181
    %v1185 = vmul.f32 %v1184, 0.6931472
    %v1186 = vlog2.pop %v1182
    %v1187 = vmul.f32 %v1186, 0.6931472
    %v1188 = vlog2.pop %v1183
    %v1189 = vmul.f32 %v1188, 0.6931472
    %v1190 = vlaneseq
    %v1191 = vand.u32 %v1190, 127
    %vm1192 = vcmp.eq.s32.totalorder %v1191, 0
    %v1193 = vsel %vm1192, 1, 0
    %v1194 = vcvt.s32.f32 %v1193
    %v1195 = vsub.f32 %v136, -15.942385
    %v1196 = vsub.f32 %v138, -15.942385
    %v1197 = vsub.f32 %v140, -15.942385
    %v1198 = vmul.f32 %v1194, %v1195
    %v1199 = vmul.f32 %v1194, %v1196
    %v1200 = vmul.f32 %v1194, %v1197
    %v1201 = vadd.f32 %v1185, %v1198
    %v1202 = vadd.f32 %v1187, %v1199
    %v1203 = vadd.f32 %v1189, %v1200
    %p1204 = scmp.ne.s32.totalorder 0, 0
    // Predicated region
    $region34: #{tpu_custom_call.1} parent=1 // pred_check
      %p1205 = pneg %p1204
    $region35: #{tpu_custom_call.1} parent=1 // pred_check_branch
      %1207 = sbr.rel (%p1205) target = $region37
    $region36: #{tpu_custom_call.1} parent=1 // pred_region
      %v1208 = vadd.f32 %v1201, %v1202
      %v1209 = vadd.f32 %v1208, %v1203
      %v1210 = vrot.slane %v1209, 4
      %v1211 = vadd.f32 %v1209, %v1210
      %v1212 = vrot.slane %v1211, 2
      %v1213 = vadd.f32 %v1211, %v1212
      %v1214 = vrot.slane %v1213, 1
      %v1215 = vadd.f32 %v1213, %v1214
      %v1216 = vmul.f32 %v1215, 0.041666668
      %v1217 = vsub.f32 %v1201, %v1216
      %v1218 = vsub.f32 %v1202, %v1216
      %v1219 = vsub.f32 %v1203, %v1216
      %v1220 = vmul.f32 %v1217, %v1217
      %v1221 = vmul.f32 %v1218, %v1218
      %v1222 = vmul.f32 %v1219, %v1219
      %v1223 = vadd.f32 %v1220, %v1221
      %v1224 = vadd.f32 %v1223, %v1222
      %v1225 = vrot.slane %v1224, 4
      %v1226 = vadd.f32 %v1224, %v1225
      %v1227 = vrot.slane %v1226, 2
      %v1228 = vadd.f32 %v1226, %v1227
      %v1229 = vrot.slane %v1228, 1
      %v1230 = vadd.f32 %v1228, %v1229
      %s1231 = smul.u32 0, 24
      %s1232 = scvt.s32.f32 %s1231
      %s1233 = sadd.f32 %s1232, 24.0
      %v1234 = vld [vmem:[#allocation2] sm:$0x1]
      %v1235 = vsub.f32 %v1216, %v1234
      %v1236 = vstv %s1233
      %v1237 = vrcp.pop %v1236
      %s1238 = vtos %v1237
      %s1239 = smul.f32 24.0, %s1238
      %v1240 = vstv %s1239
      %v1241 = vmul.f32 %v1235, %v1240
      %v1242 = vadd.f32 %v1234, %v1241
      %1243 = vst [vmem:[#allocation2] sm:$0x1] %v1242
      %v1244 = vld [vmem:[#allocation3] sm:$0x1]
      %v1245 = vadd.f32 %v1244, %v1230
      %v1246 = vmul.f32 %v1235, %v1235
      %s1247 = smul.f32 %s1232, 24.0
      %v1248 = vstv %s1233
      %v1249 = vrcp.pop %v1248
      %s1250 = vtos %v1249
      %s1251 = smul.f32 %s1247, %s1250
      %v1252 = vstv %s1251
      %v1253 = vmul.f32 %v1246, %v1252
      %v1254 = vadd.f32 %v1245, %v1253
      %1255 = vst [vmem:[#allocation3] sm:$0x1] %v1254
    $region37: #{tpu_custom_call.1} parent=1 // pred_fallthru
      _
    // Predicated region
    $region38: #{tpu_custom_call.1} parent=1 // pred_check
      %p1256 = pneg %p50
    $region39: #{tpu_custom_call.1} parent=1 // pred_check_branch
      %1258 = sbr.rel (%p1256) target = $region41
    $region40: #{tpu_custom_call.1} parent=1 // pred_region
      %s1259 = smul.u32 0, 24
      %s1260 = ssub.s32 18, %s1259
      %s1261 = scvt.s32.f32 %s1260
      %v1262 = vlaneseq
      %v1263 = vshrl.u32 %v1262, 7
      %v1264 = vadd.s32 %v1263, 8
      %v1265 = vadd.s32 %v1263, 16
      %v1266 = vstv %s1260
      %vm1267 = vcmp.lt.s32.totalorder %v1263, %v1266
      %vm1268 = vcmp.lt.s32.totalorder %v1264, %v1266
      %vm1269 = vcmp.lt.s32.totalorder %v1265, %v1266
      %v1270 = vsel %vm1267, %v1201, 0.0
      %v1271 = vsel %vm1268, %v1202, 0.0
      %v1272 = vsel %vm1269, %v1203, 0.0
      %v1273 = vadd.f32 %v1270, %v1271
      %v1274 = vadd.f32 %v1273, %v1272
      %v1275 = vrot.slane %v1274, 4
      %v1276 = vadd.f32 %v1274, %v1275
      %v1277 = vrot.slane %v1276, 2
      %v1278 = vadd.f32 %v1276, %v1277
      %v1279 = vrot.slane %v1278, 1
      %v1280 = vadd.f32 %v1278, %v1279
      %v1281 = vstv %s1261
      %v1282 = vrcp.pop %v1281
      %v1283 = vmul.f32 %v1280, %v1282
      %v1284 = vsub.f32 %v1201, %v1283
      %v1285 = vsub.f32 %v1202, %v1283
      %v1286 = vsub.f32 %v1203, %v1283
      %v1287 = vsel %vm1267, %v1284, 0.0
      %v1288 = vsel %vm1268, %v1285, 0.0
      %v1289 = vsel %vm1269, %v1286, 0.0
      %v1290 = vmul.f32 %v1287, %v1287
      %v1291 = vmul.f32 %v1288, %v1288
      %v1292 = vmul.f32 %v1289, %v1289
      %v1293 = vadd.f32 %v1290, %v1291
      %v1294 = vadd.f32 %v1293, %v1292
      %v1295 = vrot.slane %v1294, 4
      %v1296 = vadd.f32 %v1294, %v1295
      %v1297 = vrot.slane %v1296, 2
      %v1298 = vadd.f32 %v1296, %v1297
      %v1299 = vrot.slane %v1298, 1
      %v1300 = vadd.f32 %v1298, %v1299
      %s1301 = scvt.s32.f32 %s1259
      %s1302 = sadd.f32 %s1301, %s1261
      %v1303 = vld [vmem:[#allocation2] sm:$0x1]
      %v1304 = vsub.f32 %v1283, %v1303
      %v1305 = vstv %s1302
      %v1306 = vrcp.pop %v1305
      %s1307 = vtos %v1306
      %s1308 = smul.f32 %s1261, %s1307
      %v1309 = vstv %s1308
      %v1310 = vmul.f32 %v1304, %v1309
      %v1311 = vadd.f32 %v1303, %v1310
      %1312 = vst [vmem:[#allocation2] sm:$0x1] %v1311
      %v1313 = vld [vmem:[#allocation3] sm:$0x1]
      %v1314 = vadd.f32 %v1313, %v1300
      %v1315 = vmul.f32 %v1304, %v1304
      %s1316 = smul.f32 %s1301, %s1261
      %v1317 = vstv %s1302
      %v1318 = vrcp.pop %v1317
      %s1319 = vtos %v1318
      %s1320 = smul.f32 %s1316, %s1319
      %v1321 = vstv %s1320
      %v1322 = vmul.f32 %v1315, %v1321
      %v1323 = vadd.f32 %v1314, %v1322
      %1324 = vst [vmem:[#allocation3] sm:$0x1] %v1323
      %v1325 = vld [vmem:[#allocation3] sm:$0x1]
      %v1326 = vmul.f32 %v1325, 0.055555556
      %v1327 = vmax.f32 %v1326, 0.0
      %v1328 = vrsqrt.pop %v1327
      %v1329 = vmul.f32 %v1327, %v1328
      %vm1330 = vcmp.eq.f32.partialorder %v1327, inf
      %v1331 = vsel %vm1330, %v1327, %v1329
      %vm1332 = vcmp.eq.f32.partialorder %v1327, 0.0
      %v1333 = vand.u32 %v1327, 2147483648
      %v1334 = vsel %vm1332, %v1333, %v1331
      %vm1335 = vcmp.lt.s32.totalorder %v1191, 81
      %v1336 = vsel %vm1335, %v1334, 0.0
      %v1337 = vld [vmem:[%s3] sm:$0xff]
      %v1338 = vld [vmem:[%s3 + $0x8] sm:$0xff]
      %v1339 = vld [vmem:[%s3 + $0x10] sm:$0xff]
      %v1340 = vld [vmem:[%s3 + $0x18] sm:$0xff]
      %v1341 = vld [vmem:[%s3 + $0x20] sm:$0xff]
      %v1342 = vld [vmem:[%s3 + $0x28] sm:$0xff]
      %v1343 = vld [vmem:[%s3 + $0x30] sm:$0xff]
      %v1344 = vld [vmem:[%s3 + $0x38] sm:$0xff]
      %v1345 = vld [vmem:[%s3 + $0x40] sm:$0xff]
      %v1346 = vld [vmem:[%s3 + $0x48] sm:$0xff]
      %v1347 = vld [vmem:[%s3 + $0x50] sm:$0xff]
      %v1348 = vld [vmem:[%s3 + $0x58] sm:$0xff]
      %v1349 = vld [vmem:[%s3 + $0x60] sm:$0xff]
      %v1350 = vld [vmem:[%s3 + $0x68] sm:$0xff]
      %v1351 = vld [vmem:[%s3 + $0x70] sm:$0xff]
      %v1352 = vld [vmem:[%s3 + $0x78] sm:$0xff]
      %1353 = vmatprep.subr.mxu0 0.0
      %1354 = vmatpush1.msra.mxu0 %v1337
      %1355 = vmatprep.subr.mxu0 0.0
      %1356 = vmatpush1.msra.mxu0 %v1338
      %1357 = vmatprep.subr.mxu0 0.0
      %1358 = vmatpush1.msra.mxu0 %v1339
      %1359 = vmatprep.subr.mxu0 0.0
      %1360 = vmatpush1.msra.mxu0 %v1340
      %1361 = vmatprep.subr.mxu0 0.0
      %1362 = vmatpush1.msra.mxu0 %v1341
      %1363 = vmatprep.subr.mxu0 0.0
      %1364 = vmatpush1.msra.mxu0 %v1342
      %1365 = vmatprep.subr.mxu0 0.0
      %1366 = vmatpush1.msra.mxu0 %v1343
      %1367 = vmatprep.subr.mxu0 0.0
      %1368 = vmatpush1.msra.mxu0 %v1344
      %1369 = vmatprep.subr.mxu0 0.0
      %1370 = vmatpush1.msra.mxu0 %v1345
      %1371 = vmatprep.subr.mxu0 0.0
      %1372 = vmatpush1.msra.mxu0 %v1346
      %1373 = vmatprep.subr.mxu0 0.0
      %1374 = vmatpush1.msra.mxu0 %v1347
      %1375 = vmatprep.subr.mxu0 0.0
      %1376 = vmatpush1.msra.mxu0 %v1348
      %1377 = vmatprep.subr.mxu0 0.0
      %1378 = vmatpush1.msra.mxu0 %v1349
      %1379 = vmatprep.subr.mxu0 0.0
      %1380 = vmatpush1.msra.mxu0 %v1350
      %1381 = vmatprep.subr.mxu0 0.0
      %1382 = vmatpush1.msra.mxu0 %v1351
      %1383 = vmatprep.subr.mxu0 0.0
      %1384 = vmatpush1.msra.mxu0 %v1352
      %1385 = vmatprep.subr.mxu0 0.0
      %1386 = vmatpush1.msra.mxu0 0.0
      %1387 = vmatprep.subr.mxu0 0.0
      %1388 = vmatpush1.msra.mxu0 0.0
      %1389 = vmatprep.subr.mxu0 0.0
      %1390 = vmatpush1.msra.mxu0 0.0
      %1391 = vmatprep.subr.mxu0 0.0
      %1392 = vmatpush1.msra.mxu0 0.0
      %1393 = vmatprep.subr.mxu0 0.0
      %1394 = vmatpush1.msra.mxu0 0.0
      %1395 = vmatprep.subr.mxu0 0.0
      %1396 = vmatpush1.msra.mxu0 0.0
      %1397 = vmatprep.subr.mxu0 0.0
      %1398 = vmatpush1.msra.mxu0 0.0
      %1399 = vmatprep.subr.mxu0 0.0
      %1400 = vmatpush1.msra.mxu0 0.0
      %1401 = vmatprep.subr.mxu0 0.0
      %1402 = vmatpush1.msra.mxu0 0.0
      %1403 = vmatprep.subr.mxu0 0.0
      %1404 = vmatpush1.msra.mxu0 0.0
      %1405 = vmatprep.subr.mxu0 0.0
      %1406 = vmatpush1.msra.mxu0 0.0
      %1407 = vmatprep.subr.mxu0 0.0
      %1408 = vmatpush1.msra.mxu0 0.0
      %1409 = vmatprep.subr.mxu0 0.0
      %1410 = vmatpush1.msra.mxu0 0.0
      %1411 = vmatprep.subr.mxu0 0.0
      %1412 = vmatpush1.msra.mxu0 0.0
      %1413 = vmatprep.subr.mxu0 0.0
      %1414 = vmatpush1.msra.mxu0 0.0
      %1415 = vmatprep.subr.mxu0 0.0
      %1416 = vmatpush1.msra.mxu0 0.0
      %1417 = vmatprep.mubr.f32.mxu0 0.0
      %1418 = vmatmul.mubr.f32.gmra.mrb[0].mxu0 %v1336
      %v1419 = vpop.f32.mrb[0].mxu0
      %v1420 = vadd.f32 0.0, %v1419
      %v1421 = vpop.f32.mrb[0].mxu0
      %1422 = vdwg.mxu0
      %v1423 = vld [vmem:[%s4] sm:$0x1]
      %v1424 = vmul.f32 %v1420, %v1423
      %vm1425 = vcmask 253952
      %v1426 = vsel %vm1425, %v1424, 0.0
      %1427 = vadd.xlane.f32.xlu0 %v1426
      %v1428 = vpop.xlane.xlu0 %1427
      %v1429 = vrot.slane %v1428, 4
      %v1430 = vadd.f32 %v1428, %v1429
      %v1431 = vrot.slane %v1430, 2
      %v1432 = vadd.f32 %v1430, %v1431
      %v1433 = vrot.slane %v1432, 1
      %v1434 = vadd.f32 %v1432, %v1433
      %s1435 = vtos %v1434
      %v1436 = vmul.f32 %v1420, %v1420
      %v1437 = vsel %vm1425, %v1436, 0.0
      %1438 = vadd.xlane.f32.xlu0 %v1437
      %v1439 = vpop.xlane.xlu0 %1438
      %v1440 = vrot.slane %v1439, 4
      %v1441 = vadd.f32 %v1439, %v1440
      %v1442 = vrot.slane %v1441, 2
      %v1443 = vadd.f32 %v1441, %v1442
      %v1444 = vrot.slane %v1443, 1
      %v1445 = vadd.f32 %v1443, %v1444
      %s1446 = vtos %v1445
      %v1447 = vmul.f32 %v1423, %v1423
      %v1448 = vsel %vm1425, %v1447, 0.0
      %1449 = vadd.xlane.f32.xlu0 %v1448
      %v1450 = vpop.xlane.xlu0 %1449
      %v1451 = vrot.slane %v1450, 4
      %v1452 = vadd.f32 %v1450, %v1451
      %v1453 = vrot.slane %v1452, 2
      %v1454 = vadd.f32 %v1452, %v1453
      %v1455 = vrot.slane %v1454, 1
      %v1456 = vadd.f32 %v1454, %v1455
      %s1457 = vtos %v1456
      %s1458 = smax.f32 %s1446, 1e-16
      %v1459 = vstv %s1458
      %v1460 = vrsqrt.pop %v1459
      %s1461 = vtos %v1460
      %s1462 = smul.f32 %s1435, %s1461
      %s1463 = smax.f32 %s1457, 1e-16
      %v1464 = vstv %s1463
      %v1465 = vrsqrt.pop %v1464
      %s1466 = vtos %v1465
      %s1467 = smul.f32 %s1462, %s1466
      %v1468 = vstv %s1467
      %vm1469 = vcmask 0
      %1470 = vst.msk [vmem:[#allocation9] sm:$0x1] %vm1469, %v1468
    $region41: #{tpu_custom_call.1} parent=1 // pred_fallthru
      _
    // Predicated region
    $region42: #{tpu_custom_call.1} parent=1 // pred_check
      _
    $region43: #{tpu_custom_call.1} parent=1 // pred_check_branch
      %1472 = sbr.rel (0) target = $region45
    $region44: #{tpu_custom_call.1} parent=1 // pred_region
      %s1474 = ssub.s32 16, 16
      %1475 = vsyncadd [#allocation6], %s1474
      %s1477 = sshll.u32 [#allocation9], 4
      %s1478 = int_to_ptr.vmem [resolvable:$true] %s1477
      %1480 = dma.vmem_to_hbm [thread:$0]  %s1478, 16, %s5, [#allocation6]
    $region45: #{tpu_custom_call.1} parent=1 // pred_fallthru
      _
    // Predicated region
    $region46: #{tpu_custom_call.1} parent=1 // pred_check
      _
    $region47: #{tpu_custom_call.1} parent=1 // pred_check_branch
      %1482 = sbr.rel (0) target = $region49
    $region48: #{tpu_custom_call.1} parent=1 // pred_region
      %1483 = dma.done [#allocation6], 16
    $region49: #{tpu_custom_call.1} parent=1 // pred_fallthru
      _
    %1484 = vsyncpa [#allocation5], 1
    %1485 = vsyncpa [#allocation8], 1
    %1486 = vsyncpa [#allocation6], 1

</llo_original>
